<compile_context>
chip_gen: v7x
topology: tpu7x:2x2x1
jax: 0.10.0
libtpu: 0.0.40
codegen_flags: <defaults>
</compile_context>

<pallas_src>
import functools

import jax
import jax.numpy as jnp
from jax.experimental import pallas as pl
from jax.experimental.pallas import tpu as pltpu

_EPS = 1e-12          # F.normalize default eps
_EPS2 = _EPS * _EPS   # clamp on the squared norm == clamping the norm at eps


def _js_loss_kernel(x1_ref, x2_ref, xa_ref, loss_ref, na_ref, *,
                    inv_t, inv_t2, batch):
    i = pl.program_id(0)
    tile = x1_ref.shape[0]

    def l2_normalize(x):
        x = x.astype(jnp.float32)
        ss = jnp.sum(x * x, axis=-1, keepdims=True)
        return x * jax.lax.rsqrt(jnp.maximum(ss, _EPS2))   # EUP rsqrt, no divide

    @pl.when(i == 0)
    def _init():
        # Normalize the anchor matrix once, cache it; zero the loss accumulator.
        na_ref[...] = l2_normalize(xa_ref[...])
        loss_ref[...] = jnp.zeros_like(loss_ref)

    n1 = l2_normalize(x1_ref[...])
    n2 = l2_normalize(x2_ref[...])
    na = na_ref[...]

    nt_dims = (((1,), (1,)), ((), ()))   # contract feature dim: A @ B.T on MXU
    s1 = jax.lax.dot_general(n1, na, nt_dims,
                             precision=jax.lax.Precision.HIGHEST,
                             preferred_element_type=jnp.float32)
    s2 = jax.lax.dot_general(n2, na, nt_dims,
                             precision=jax.lax.Precision.HIGHEST,
                             preferred_element_type=jnp.float32)

    def log_softmax(logits):
        z = logits - jnp.max(logits, axis=-1, keepdims=True)
        return z - jnp.log(jnp.sum(jnp.exp(z), axis=-1, keepdims=True))

    def softmax(logits):
        e = jnp.exp(logits - jnp.max(logits, axis=-1, keepdims=True))
        return e / jnp.sum(e, axis=-1, keepdims=True)

    logp1 = log_softmax(s1 * inv_t)
    logp2 = log_softmax(s2 * inv_t)
    target = 0.5 * (softmax(s1 * inv_t2) + softmax(s2 * inv_t2))

    # kl_div(logp, target) pointwise = target * (log(target) - logp);
    # the target*log(target) term is shared between the two KL terms.
    t_log_t = target * jnp.log(jnp.where(target > 0.0, target, 1.0))
    kl_elem = 2.0 * t_log_t - target * (logp1 + logp2)     # (tile, A)
    kl_rows = jnp.sum(kl_elem, axis=-1, keepdims=True)     # (tile, 1)

    # Mask rows that are batch padding.
    row_ids = jax.lax.broadcasted_iota(jnp.int32, (tile, 1), 0) + i * tile
    valid = (row_ids < batch).astype(jnp.float32)

    # (kl1_sum + kl2_sum) / batch / 2, folded per step (linear reduction).
    loss_ref[...] += jnp.sum(kl_rows * valid, axis=0, keepdims=True) * (0.5 / batch)


def _choose_tile_rows(batch, d, a, budget_bytes=10 * 1024 * 1024):
    """Largest batch-row tile (multiple of 8, <= 512) whose working set fits a
    conservative VMEM budget valid on v5e/v6e/v7x default scoped VMEM."""
    def vmem_estimate(tile):
        in_bufs = 2 * 2 * tile * d      # x1/x2 blocks, double-buffered
        xa_bufs = 3 * a * d             # xa input buffers + normalized scratch
        temps = 8 * tile * a            # similarity / softmax temporaries
        return 4 * (in_bufs + xa_bufs + temps)   # f32 bytes

    tile = 512
    while tile > 8 and vmem_estimate(tile) > budget_bytes:
        tile //= 2
    batch_pad8 = ((batch + 7) // 8) * 8
    return max(8, min(tile, batch_pad8))


def js_loss(x1, x2, xa, t=0.1, t2=0.01, tile_rows=None):
    batch, d = x1.shape
    a, d2 = xa.shape
    assert x2.shape == (batch, d) and d2 == d

    if tile_rows is None:
        tile_rows = _choose_tile_rows(batch, d, a)
    assert tile_rows % 8 == 0

    batch_pad = ((batch + tile_rows - 1) // tile_rows) * tile_rows
    if batch_pad != batch:
        pad = ((0, batch_pad - batch), (0, 0))
        x1 = jnp.pad(x1, pad)
        x2 = jnp.pad(x2, pad)
    grid = (batch_pad // tile_rows,)

    kernel = functools.partial(
        _js_loss_kernel, inv_t=1.0 / t, inv_t2=1.0 / t2, batch=batch)

    out = pl.pallas_call(
        kernel,
        out_shape=jax.ShapeDtypeStruct((1, 1), jnp.float32),
        grid_spec=pltpu.PrefetchScalarGridSpec(
            num_scalar_prefetch=0,
            grid=grid,
            in_specs=[
                pl.BlockSpec((tile_rows, d), lambda i: (i, 0)),   # x1 tile
                pl.BlockSpec((tile_rows, d), lambda i: (i, 0)),   # x2 tile
                pl.BlockSpec((a, d), lambda i: (0, 0)),           # xa resident
            ],
            out_specs=pl.BlockSpec((1, 1), lambda i: (0, 0)),     # scalar acc
            scratch_shapes=[
                pltpu.VMEM((a, d), jnp.float32),                  # normalized xa
            ],
        ),
        compiler_params=pltpu.CompilerParams(
            dimension_semantics=("arbitrary",),   # reduction over batch tiles
        ),
    )(x1, x2, xa)
    return out[0, 0]


class JSLoss:
    """JAX/Pallas port of the PyTorch JSLoss module (forward pass)."""

    def __init__(self, t=0.1, t2=0.01):
        self.t = t
        self.t2 = t2

    def forward(self, x1, x2, xa):
        return js_loss(x1, x2, xa, t=self.t, t2=self.t2)

    def __call__(self, x1, x2, xa):
        return self.forward(x1, x2, xa)


def _js_loss_ref(x1, x2, xa, t, t2):
    """Plain-JAX reference with PyTorch F.normalize / kl_div semantics."""
    def norm(v):
        n = jnp.sqrt(jnp.sum(v * v, axis=-1, keepdims=True))
        return v / jnp.maximum(n, _EPS)

    hp = jax.lax.Precision.HIGHEST
    n1, n2, na = norm(x1), norm(x2), norm(xa)
    s1 = jnp.dot(n1, na.T, precision=hp)
    s2 = jnp.dot(n2, na.T, precision=hp)
    logp1 = jax.nn.log_softmax(s1 / t, axis=1)
    logp2 = jax.nn.log_softmax(s2 / t, axis=1)
    target = 0.5 * (jax.nn.softmax(s1 / t2, axis=1) + jax.nn.softmax(s2 / t2, axis=1))
    t_log_t = target * jnp.log(jnp.where(target > 0.0, target, 1.0))
    b = x1.shape[0]
    kl1 = jnp.sum(t_log_t - target * logp1) / b
    kl2 = jnp.sum(t_log_t - target * logp2) / b
    return (kl1 + kl2) / 2.0


if __name__ == "__main__":
    # Small shapes consistent with the module: two views of a batch plus an
    # anchor set, shared feature dim (lane-dense 128).
    batch, n_anchor, dim = 16, 32, 128
    t, t2 = 0.1, 0.01

    key = jax.random.PRNGKey(0)
    k1, k2, ka = jax.random.split(key, 3)
    x1 = jax.random.normal(k1, (batch, dim), dtype=jnp.float32)
    x2 = jax.random.normal(k2, (batch, dim), dtype=jnp.float32)
    xa = jax.random.normal(ka, (n_anchor, dim), dtype=jnp.float32)

    mod = JSLoss(t=t, t2=t2)
    loss = mod(x1, x2, xa)
    loss = jax.block_until_ready(loss)

    ref = _js_loss_ref(x1, x2, xa, t, t2)
    assert jnp.isfinite(loss), loss
    assert jnp.allclose(loss, ref, rtol=1e-3, atol=1e-5), (loss, ref)

    print("KERNEL_OK")
</pallas_src>

<mosaic_0001>
module attributes {stable_mosaic.version = 11 : i64} {
  func.func @_js_loss_kernel(%arg0: i32, %arg1: memref<16x128xf32, #tpu.memory_space<vmem>>, %arg2: memref<16x128xf32, #tpu.memory_space<vmem>>, %arg3: memref<32x128xf32, #tpu.memory_space<vmem>>, %arg4: memref<1x1xf32, #tpu.memory_space<vmem>>, %arg5: memref<32x128xf32, #tpu.memory_space<vmem>>) attributes {dimension_semantics = [#tpu.dimension_semantics<arbitrary>], iteration_bounds = array<i64: 1>, scalar_prefetch = 0 : i64, scratch_operands = 1 : i64, tpu.core_type = #tpu.core_type<tc>, window_params = [{transform_indices = @transform_0, window_bounds = array<i64: 16, 128>}, {transform_indices = @transform_1, window_bounds = array<i64: 16, 128>}, {pipeline_mode = #tpu.pipeline_mode<synchronous>, transform_indices = @transform_2, window_bounds = array<i64: 32, 128>}, {pipeline_mode = #tpu.pipeline_mode<synchronous>, transform_indices = @transform_3, window_bounds = array<i64: 1, 1>}]} {
    %c0_i32 = arith.constant 0 : i32
    %0 = arith.cmpi eq, %arg0, %c0_i32 : i32
    %1 = arith.extui %0 : i1 to i32
    %c0_i32_0 = arith.constant 0 : i32
    %2 = arith.cmpi ne, %1, %c0_i32_0 : i32
    scf.if %2 {
      %c0_35 = arith.constant 0 : index
      %c0_36 = arith.constant 0 : index
      %102 = vector.load %arg3[%c0_35, %c0_36] : memref<32x128xf32, #tpu.memory_space<vmem>>, vector<32x128xf32>
      %103 = arith.mulf %102, %102 : vector<32x128xf32>
      %cst_37 = arith.constant dense<0.000000e+00> : vector<32xf32>
      %104 = vector.multi_reduction <add>, %103, %cst_37 [1] : vector<32x128xf32> to vector<32xf32>
      %105 = vector.shape_cast %104 : vector<32xf32> to vector<32x1xf32>
      %cst_38 = arith.constant 1.000000e-24 : f32
      %106 = vector.broadcast %cst_38 : f32 to vector<32x1xf32>
      %107 = arith.maximumf %105, %106 : vector<32x1xf32>
      %108 = math.rsqrt %107 : vector<32x1xf32>
      %109 = vector.broadcast %108 : vector<32x1xf32> to vector<32x128xf32>
      %110 = arith.mulf %102, %109 : vector<32x128xf32>
      %c0_39 = arith.constant 0 : index
      %c0_40 = arith.constant 0 : index
      %111 = vector.load %arg5[%c0_39, %c0_40] : memref<32x128xf32, #tpu.memory_space<vmem>>, vector<32x128xf32>
      tpu.vector_store %arg5[%c0_39, %c0_40], %110 {strides = array<i32>} : memref<32x128xf32, #tpu.memory_space<vmem>>, vector<32x128xf32>,
      %cst_41 = arith.constant 0.000000e+00 : f32
      %112 = vector.broadcast %cst_41 : f32 to vector<1x1xf32>
      %c0_42 = arith.constant 0 : index
      %c0_43 = arith.constant 0 : index
      %113 = vector.load %arg4[%c0_42, %c0_43] : memref<1x1xf32, #tpu.memory_space<vmem>>, vector<1x1xf32>
      tpu.vector_store %arg4[%c0_42, %c0_43], %112 {strides = array<i32>} : memref<1x1xf32, #tpu.memory_space<vmem>>, vector<1x1xf32>,
    } else {
    }
    %c0 = arith.constant 0 : index
    %c0_1 = arith.constant 0 : index
    %3 = vector.load %arg1[%c0, %c0_1] : memref<16x128xf32, #tpu.memory_space<vmem>>, vector<16x128xf32>
    %4 = arith.mulf %3, %3 : vector<16x128xf32>
    %cst = arith.constant dense<0.000000e+00> : vector<16xf32>
    %5 = vector.multi_reduction <add>, %4, %cst [1] : vector<16x128xf32> to vector<16xf32>
    %6 = vector.shape_cast %5 : vector<16xf32> to vector<16x1xf32>
    %cst_2 = arith.constant 1.000000e-24 : f32
    %7 = vector.broadcast %cst_2 : f32 to vector<16x1xf32>
    %8 = arith.maximumf %6, %7 : vector<16x1xf32>
    %9 = math.rsqrt %8 : vector<16x1xf32>
    %10 = vector.broadcast %9 : vector<16x1xf32> to vector<16x128xf32>
    %11 = arith.mulf %3, %10 : vector<16x128xf32>
    %c0_3 = arith.constant 0 : index
    %c0_4 = arith.constant 0 : index
    %12 = vector.load %arg2[%c0_3, %c0_4] : memref<16x128xf32, #tpu.memory_space<vmem>>, vector<16x128xf32>
    %13 = arith.mulf %12, %12 : vector<16x128xf32>
    %cst_5 = arith.constant dense<0.000000e+00> : vector<16xf32>
    %14 = vector.multi_reduction <add>, %13, %cst_5 [1] : vector<16x128xf32> to vector<16xf32>
    %15 = vector.shape_cast %14 : vector<16xf32> to vector<16x1xf32>
    %cst_6 = arith.constant 1.000000e-24 : f32
    %16 = vector.broadcast %cst_6 : f32 to vector<16x1xf32>
    %17 = arith.maximumf %15, %16 : vector<16x1xf32>
    %18 = math.rsqrt %17 : vector<16x1xf32>
    %19 = vector.broadcast %18 : vector<16x1xf32> to vector<16x128xf32>
    %20 = arith.mulf %12, %19 : vector<16x128xf32>
    %c0_7 = arith.constant 0 : index
    %c0_8 = arith.constant 0 : index
    %21 = vector.load %arg5[%c0_7, %c0_8] : memref<32x128xf32, #tpu.memory_space<vmem>>, vector<32x128xf32>
    %cst_9 = arith.constant dense<0.000000e+00> : vector<16x32xf32>
    %22 = tpu.matmul %11, %21, %cst_9 {dimension_numbers = #tpu.dot_dimension_numbers<[1], [1], [0], [0], [0, 0, 1, 0], [], []>, precision = #tpu.contract_precision<fp32>} : vector<16x128xf32>, vector<32x128xf32>, vector<16x32xf32> -> vector<16x32xf32>
    %cst_10 = arith.constant dense<0.000000e+00> : vector<16x32xf32>
    %23 = tpu.matmul %20, %21, %cst_10 {dimension_numbers = #tpu.dot_dimension_numbers<[1], [1], [0], [0], [0, 0, 1, 0], [], []>, precision = #tpu.contract_precision<fp32>} : vector<16x128xf32>, vector<32x128xf32>, vector<16x32xf32> -> vector<16x32xf32>
    %cst_11 = arith.constant 1.000000e+01 : f32
    %24 = vector.broadcast %cst_11 : f32 to vector<16x32xf32>
    %25 = arith.mulf %22, %24 : vector<16x32xf32>
    %cst_12 = arith.constant dense<0xFF800000> : vector<16xf32>
    %26 = vector.multi_reduction <maximumf>, %25, %cst_12 [1] : vector<16x32xf32> to vector<16xf32>
    %27 = vector.shape_cast %26 : vector<16xf32> to vector<16x1xf32>
    %28 = vector.broadcast %27 : vector<16x1xf32> to vector<16x32xf32>
    %29 = arith.subf %25, %28 : vector<16x32xf32>
    %30 = math.exp %29 : vector<16x32xf32>
    %cst_13 = arith.constant dense<0.000000e+00> : vector<16xf32>
    %31 = vector.multi_reduction <add>, %30, %cst_13 [1] : vector<16x32xf32> to vector<16xf32>
    %32 = vector.shape_cast %31 : vector<16xf32> to vector<16x1xf32>
    %33 = math.log %32 : vector<16x1xf32>
    %34 = vector.broadcast %33 : vector<16x1xf32> to vector<16x32xf32>
    %35 = arith.subf %29, %34 : vector<16x32xf32>
    %cst_14 = arith.constant 1.000000e+01 : f32
    %36 = vector.broadcast %cst_14 : f32 to vector<16x32xf32>
    %37 = arith.mulf %23, %36 : vector<16x32xf32>
    %cst_15 = arith.constant dense<0xFF800000> : vector<16xf32>
    %38 = vector.multi_reduction <maximumf>, %37, %cst_15 [1] : vector<16x32xf32> to vector<16xf32>
    %39 = vector.shape_cast %38 : vector<16xf32> to vector<16x1xf32>
    %40 = vector.broadcast %39 : vector<16x1xf32> to vector<16x32xf32>
    %41 = arith.subf %37, %40 : vector<16x32xf32>
    %42 = math.exp %41 : vector<16x32xf32>
    %cst_16 = arith.constant dense<0.000000e+00> : vector<16xf32>
    %43 = vector.multi_reduction <add>, %42, %cst_16 [1] : vector<16x32xf32> to vector<16xf32>
    %44 = vector.shape_cast %43 : vector<16xf32> to vector<16x1xf32>
    %45 = math.log %44 : vector<16x1xf32>
    %46 = vector.broadcast %45 : vector<16x1xf32> to vector<16x32xf32>
    %47 = arith.subf %41, %46 : vector<16x32xf32>
    %cst_17 = arith.constant 1.000000e+02 : f32
    %48 = vector.broadcast %cst_17 : f32 to vector<16x32xf32>
    %49 = arith.mulf %22, %48 : vector<16x32xf32>
    %cst_18 = arith.constant dense<0xFF800000> : vector<16xf32>
    %50 = vector.multi_reduction <maximumf>, %49, %cst_18 [1] : vector<16x32xf32> to vector<16xf32>
    %51 = vector.shape_cast %50 : vector<16xf32> to vector<16x1xf32>
    %52 = vector.broadcast %51 : vector<16x1xf32> to vector<16x32xf32>
    %53 = arith.subf %49, %52 : vector<16x32xf32>
    %54 = math.exp %53 : vector<16x32xf32>
    %cst_19 = arith.constant dense<0.000000e+00> : vector<16xf32>
    %55 = vector.multi_reduction <add>, %54, %cst_19 [1] : vector<16x32xf32> to vector<16xf32>
    %56 = vector.shape_cast %55 : vector<16xf32> to vector<16x1xf32>
    %57 = vector.broadcast %56 : vector<16x1xf32> to vector<16x32xf32>
    %58 = arith.divf %54, %57 : vector<16x32xf32>
    %cst_20 = arith.constant 1.000000e+02 : f32
    %59 = vector.broadcast %cst_20 : f32 to vector<16x32xf32>
    %60 = arith.mulf %23, %59 : vector<16x32xf32>
    %cst_21 = arith.constant dense<0xFF800000> : vector<16xf32>
    %61 = vector.multi_reduction <maximumf>, %60, %cst_21 [1] : vector<16x32xf32> to vector<16xf32>
    %62 = vector.shape_cast %61 : vector<16xf32> to vector<16x1xf32>
    %63 = vector.broadcast %62 : vector<16x1xf32> to vector<16x32xf32>
    %64 = arith.subf %60, %63 : vector<16x32xf32>
    %65 = math.exp %64 : vector<16x32xf32>
    %cst_22 = arith.constant dense<0.000000e+00> : vector<16xf32>
    %66 = vector.multi_reduction <add>, %65, %cst_22 [1] : vector<16x32xf32> to vector<16xf32>
    %67 = vector.shape_cast %66 : vector<16xf32> to vector<16x1xf32>
    %68 = vector.broadcast %67 : vector<16x1xf32> to vector<16x32xf32>
    %69 = arith.divf %65, %68 : vector<16x32xf32>
    %70 = arith.addf %58, %69 : vector<16x32xf32>
    %cst_23 = arith.constant 5.000000e-01 : f32
    %71 = vector.broadcast %cst_23 : f32 to vector<16x32xf32>
    %72 = arith.mulf %71, %70 : vector<16x32xf32>
    %cst_24 = arith.constant 0.000000e+00 : f32
    %73 = vector.broadcast %cst_24 : f32 to vector<16x32xf32>
    %74 = arith.cmpf ogt, %72, %73 : vector<16x32xf32>
    %cst_25 = arith.constant 1.000000e+00 : f32
    %75 = vector.broadcast %cst_25 : f32 to vector<16x32xf32>
    %76 = arith.select %74, %72, %75 : vector<16x32xi1>, vector<16x32xf32>
    %77 = math.log %76 : vector<16x32xf32>
    %78 = arith.mulf %72, %77 : vector<16x32xf32>
    %cst_26 = arith.constant 2.000000e+00 : f32
    %79 = vector.broadcast %cst_26 : f32 to vector<16x32xf32>
    %80 = arith.mulf %79, %78 : vector<16x32xf32>
    %81 = arith.addf %35, %47 : vector<16x32xf32>
    %82 = arith.mulf %72, %81 : vector<16x32xf32>
    %83 = arith.subf %80, %82 : vector<16x32xf32>
    %cst_27 = arith.constant dense<0.000000e+00> : vector<16xf32>
    %84 = vector.multi_reduction <add>, %83, %cst_27 [1] : vector<16x32xf32> to vector<16xf32>
    %85 = vector.shape_cast %84 : vector<16xf32> to vector<16x1xf32>
    %86 = tpu.iota {dimensions = array<i32: 0>} : vector<16x1xi32>
    %c16_i32 = arith.constant 16 : i32
    %87 = arith.muli %arg0, %c16_i32 : i32
    %88 = vector.broadcast %87 : i32 to vector<16x1xi32>
    %89 = arith.addi %86, %88 : vector<16x1xi32>
    %c16_i32_28 = arith.constant 16 : i32
    %90 = vector.broadcast %c16_i32_28 : i32 to vector<16x1xi32>
    %91 = arith.cmpi slt, %89, %90 : vector<16x1xi32>
    %92 = arith.extui %91 : vector<16x1xi1> to vector<16x1xi32>
    %93 = arith.sitofp %92 : vector<16x1xi32> to vector<16x1xf32>
    %c0_29 = arith.constant 0 : index
    %c0_30 = arith.constant 0 : index
    %94 = vector.load %arg4[%c0_29, %c0_30] : memref<1x1xf32, #tpu.memory_space<vmem>>, vector<1x1xf32>
    %95 = arith.mulf %85, %93 : vector<16x1xf32>
    %cst_31 = arith.constant dense<0.000000e+00> : vector<1xf32>
    %96 = vector.multi_reduction <add>, %95, %cst_31 [0] : vector<16x1xf32> to vector<1xf32>
    %97 = vector.shape_cast %96 : vector<1xf32> to vector<1x1xf32>
    %cst_32 = arith.constant 3.125000e-02 : f32
    %98 = vector.broadcast %cst_32 : f32 to vector<1x1xf32>
    %99 = arith.mulf %97, %98 : vector<1x1xf32>
    %100 = arith.addf %94, %99 : vector<1x1xf32>
    %c0_33 = arith.constant 0 : index
    %c0_34 = arith.constant 0 : index
    %101 = vector.load %arg4[%c0_33, %c0_34] : memref<1x1xf32, #tpu.memory_space<vmem>>, vector<1x1xf32>
    tpu.vector_store %arg4[%c0_33, %c0_34], %100 {strides = array<i32>} : memref<1x1xf32, #tpu.memory_space<vmem>>, vector<1x1xf32>,
    return
  }
  func.func @transform_0(%arg0: i32) -> (i32, i32) {
    %c0_i32 = arith.constant 0 : i32
    %c0_i32_0 = arith.constant 0 : i32
    return %arg0, %c0_i32 : i32, i32
  }
  func.func @transform_1(%arg0: i32) -> (i32, i32) {
    %c0_i32 = arith.constant 0 : i32
    %c0_i32_0 = arith.constant 0 : i32
    return %arg0, %c0_i32 : i32, i32
  }
  func.func @transform_2(%arg0: i32) -> (i32, i32) {
    %c0_i32 = arith.constant 0 : i32
    %c0_i32_0 = arith.constant 0 : i32
    %c0_i32_1 = arith.constant 0 : i32
    return %c0_i32, %c0_i32_0 : i32, i32
  }
  func.func @transform_3(%arg0: i32) -> (i32, i32) {
    %c0_i32 = arith.constant 0 : i32
    %c0_i32_0 = arith.constant 0 : i32
    %c0_i32_1 = arith.constant 0 : i32
    return %c0_i32, %c0_i32_0 : i32, i32
  }
}

</mosaic_0001>

<llo_original>
// kernel: tpu_custom_call.1
$region0: #{tpu_custom_call.1}
  #allocation0 [shape = 'u32[]', space=smem, size = 0x4, offset = 0x4, fixed_abs, tag = 'smem constant byte address 0x4 - core index']
  #allocation1 [shape = 'u32[144,128]{1,0:T(1,128)}', space=vmem, size = 0x12000, scoped, tag = 'internal scratch']
  #allocation2 [shape = 'f32[32,128]{1,0:T(8,128)}', space=vmem, size = 0x4000, scoped, tag = 'scratch operand']
  %s0 = inlined_call_operand.hbm [shape: f32[16,128], index: 0, kind: input, shape index: {}]
  %s1 = inlined_call_operand.hbm [shape: f32[16,128], index: 1, kind: input, shape index: {}]
  %s2 = inlined_call_operand.hbm [shape: f32[32,128], index: 2, kind: input, shape index: {}]
  %s3 = inlined_call_operand.hbm [shape: f32[1,1], index: 3, kind: output, shape index: {}]
  %s4 = sld [smem:[#allocation0]]
  $region38: #{tpu_custom_call.1} parent=0
    _
  %s6 = ssub.s32 1, %s4
  %s7 = scalar_select 0, %s6, %s4
  $region1: #{tpu_custom_call.1} parent=0
    #allocation3 [shape = 'u8[8192]{0}', space=vmem, size = 0x2000, scoped, tag = 'input window, operand 0, single buffered']
    #allocation4 [shape = 's32[1]{0}', space=sflag, size = 0x4, scoped, tag = 'scoped memory for tpu_custom_call.1']
    #allocation5 [shape = 's32[1]{0}', space=sflag, size = 0x4, scoped, tag = 'scoped memory for tpu_custom_call.1']
    #allocation6 [shape = 'u8[8192]{0}', space=vmem, size = 0x2000, scoped, tag = 'input window, operand 1, single buffered']
    #allocation7 [shape = 's32[1]{0}', space=sflag, size = 0x4, scoped, tag = 'scoped memory for tpu_custom_call.1']
    #allocation8 [shape = 'u8[16384]{0}', space=vmem, size = 0x4000, scoped, tag = 'input window, operand 2, single buffered']
    #allocation9 [shape = 'u8[512]{0}', space=vmem, size = 0x400, scoped, tag = 'output window, operand 0, single buffered']
    %8 = vsyncpa [#allocation4], 0
    %9 = vsyncpa [#allocation7], 0
    %10 = vsyncpa [#allocation5], 0
    // Predicated region
    $region2: #{tpu_custom_call.1} parent=1 // pred_check
      _
    $region3: #{tpu_custom_call.1} parent=1 // pred_check_branch
      %12 = sbr.rel (0) target = $region5
    $region4: #{tpu_custom_call.1} parent=1 // pred_region
      %s14 = ssub.s32 256, 256
      %15 = vsyncadd [#allocation4], %s14
      %s16 = sshll.u32 [#allocation3], 4
      %s17 = int_to_ptr.vmem [resolvable:$true] %s16
      %22 = dma.hbm_to_vmem [thread:$0]  %s0, 256, %s17, [#allocation4], 128, 128, 8
    $region5: #{tpu_custom_call.1} parent=1 // pred_fallthru
      _
    // Predicated region
    $region6: #{tpu_custom_call.1} parent=1 // pred_check
      _
    $region7: #{tpu_custom_call.1} parent=1 // pred_check_branch
      %24 = sbr.rel (0) target = $region9
    $region8: #{tpu_custom_call.1} parent=1 // pred_region
      %s26 = ssub.s32 256, 256
      %27 = vsyncadd [#allocation7], %s26
      %s28 = sshll.u32 [#allocation6], 4
      %s29 = int_to_ptr.vmem [resolvable:$true] %s28
      %34 = dma.hbm_to_vmem [thread:$0]  %s1, 256, %s29, [#allocation7], 128, 128, 8
    $region9: #{tpu_custom_call.1} parent=1 // pred_fallthru
      _
    // Predicated region
    $region10: #{tpu_custom_call.1} parent=1 // pred_check
      _
    $region11: #{tpu_custom_call.1} parent=1 // pred_check_branch
      %36 = sbr.rel (0) target = $region13
    $region12: #{tpu_custom_call.1} parent=1 // pred_region
      %s38 = ssub.s32 512, 512
      %39 = vsyncadd [#allocation7], %s38
      %s40 = sshll.u32 [#allocation8], 4
      %s41 = int_to_ptr.vmem [resolvable:$true] %s40
      %46 = dma.hbm_to_vmem [thread:$0]  %s2, 512, %s41, [#allocation7], 128, 128, 8
    $region13: #{tpu_custom_call.1} parent=1 // pred_fallthru
      _
    // Predicated region
    $region14: #{tpu_custom_call.1} parent=1 // pred_check
      _
    $region15: #{tpu_custom_call.1} parent=1 // pred_check_branch
      %48 = sbr.rel (0) target = $region17
    $region16: #{tpu_custom_call.1} parent=1 // pred_region
      %49 = dma.done [#allocation4], 256
    $region17: #{tpu_custom_call.1} parent=1 // pred_fallthru
      _
    // Predicated region
    $region18: #{tpu_custom_call.1} parent=1 // pred_check
      _
    $region19: #{tpu_custom_call.1} parent=1 // pred_check_branch
      %51 = sbr.rel (0) target = $region21
    $region20: #{tpu_custom_call.1} parent=1 // pred_region
      %52 = dma.done [#allocation7], 256
    $region21: #{tpu_custom_call.1} parent=1 // pred_fallthru
      _
    // Predicated region
    $region22: #{tpu_custom_call.1} parent=1 // pred_check
      _
    $region23: #{tpu_custom_call.1} parent=1 // pred_check_branch
      %54 = sbr.rel (0) target = $region25
    $region24: #{tpu_custom_call.1} parent=1 // pred_region
      %55 = dma.done [#allocation7], 512
    $region25: #{tpu_custom_call.1} parent=1 // pred_fallthru
      _
    %p56 = scmp.eq.s32.totalorder 0, 0
    // Predicated region
    $region26: #{tpu_custom_call.1} parent=1 // pred_check
      %p57 = pneg %p56
    $region27: #{tpu_custom_call.1} parent=1 // pred_check_branch
      %59 = sbr.rel (%p57) target = $region29
    $region28: #{tpu_custom_call.1} parent=1 // pred_region
      %v60 = vld [vmem:[#allocation8] sm:$0xff]
      %v61 = vld [vmem:[#allocation8 + $0x8] sm:$0xff]
      %v62 = vld [vmem:[#allocation8 + $0x10] sm:$0xff]
      %v63 = vld [vmem:[#allocation8 + $0x18] sm:$0xff]
      %v64 = vmul.f32 %v60, %v60
      %v65 = vmul.f32 %v61, %v61
      %v66 = vmul.f32 %v62, %v62
      %v67 = vmul.f32 %v63, %v63
      %68 = vadd.xlane.f32.xlu0 %v64
      %v69 = vpop.xlane.xlu0 %68
      %70 = vadd.xlane.f32.xlu0 %v65
      %v71 = vpop.xlane.xlu0 %70
      %72 = vadd.xlane.f32.xlu0 %v66
      %v73 = vpop.xlane.xlu0 %72
      %74 = vadd.xlane.f32.xlu0 %v67
      %v75 = vpop.xlane.xlu0 %74
      %v76 = vmax.f32 %v69, 1e-24
      %v77 = vmax.f32 %v71, 1e-24
      %v78 = vmax.f32 %v73, 1e-24
      %v79 = vmax.f32 %v75, 1e-24
      %v80 = vrsqrt.pop %v76
      %v81 = vrsqrt.pop %v77
      %v82 = vrsqrt.pop %v78
      %v83 = vrsqrt.pop %v79
      %v84 = vmul.f32 %v60, %v80
      %v85 = vmul.f32 %v61, %v81
      %v86 = vmul.f32 %v62, %v82
      %v87 = vmul.f32 %v63, %v83
      %88 = vst [vmem:[#allocation2] sm:$0xff] %v84
      %89 = vst [vmem:[#allocation2 + $0x8] sm:$0xff] %v85
      %90 = vst [vmem:[#allocation2 + $0x10] sm:$0xff] %v86
      %91 = vst [vmem:[#allocation2 + $0x18] sm:$0xff] %v87
      %vm92 = vcmask 0
      %93 = vst.msk [vmem:[#allocation9] sm:$0x1] %vm92, 0.0
    $region29: #{tpu_custom_call.1} parent=1 // pred_fallthru
      _
    %v94 = vld [vmem:[#allocation3] sm:$0xff]
    %v95 = vld [vmem:[#allocation3 + $0x8] sm:$0xff]
    %v96 = vmul.f32 %v94, %v94
    %v97 = vmul.f32 %v95, %v95
    %98 = vadd.xlane.f32.xlu0 %v96
    %v99 = vpop.xlane.xlu0 %98
    %100 = vadd.xlane.f32.xlu0 %v97
    %v101 = vpop.xlane.xlu0 %100
    %v102 = vmax.f32 %v99, 1e-24
    %v103 = vmax.f32 %v101, 1e-24
    %v104 = vrsqrt.pop %v102
    %v105 = vrsqrt.pop %v103
    %v106 = vmul.f32 %v94, %v104
    %v107 = vmul.f32 %v95, %v105
    %v108 = vld [vmem:[#allocation6] sm:$0xff]
    %v109 = vld [vmem:[#allocation6 + $0x8] sm:$0xff]
    %v110 = vmul.f32 %v108, %v108
    %v111 = vmul.f32 %v109, %v109
    %112 = vadd.xlane.f32.xlu0 %v110
    %v113 = vpop.xlane.xlu0 %112
    %114 = vadd.xlane.f32.xlu0 %v111
    %v115 = vpop.xlane.xlu0 %114
    %v116 = vmax.f32 %v113, 1e-24
    %v117 = vmax.f32 %v115, 1e-24
    %v118 = vrsqrt.pop %v116
    %v119 = vrsqrt.pop %v117
    %v120 = vmul.f32 %v108, %v118
    %v121 = vmul.f32 %v109, %v119
    %v122 = vld [vmem:[#allocation2] sm:$0xff]
    %v123 = vld [vmem:[#allocation2 + $0x8] sm:$0xff]
    %v124 = vld [vmem:[#allocation2 + $0x10] sm:$0xff]
    %v125 = vld [vmem:[#allocation2 + $0x18] sm:$0xff]
    %126 = vmatprep.subr.mxu0 0.0
    %v127 = vand.u32 %v122, 4294901760
    %128 = vmatpush1.xpose.msra.mxu0 %v127
    %129 = vmatprep.subr.mxu0 0.0
    %v130 = vand.u32 %v123, 4294901760
    %131 = vmatpush1.xpose.msra.mxu0 %v130
    %132 = vmatprep.subr.mxu0 0.0
    %v133 = vand.u32 %v124, 4294901760
    %134 = vmatpush1.xpose.msra.mxu0 %v133
    %135 = vmatprep.subr.mxu0 0.0
    %v136 = vand.u32 %v125, 4294901760
    %137 = vmatpush1.xpose.msra.mxu0 %v136
    %138 = vmatprep.subr.mxu0 0.0
    %139 = vmatpush1.xpose.msra.mxu0 0.0
    %140 = vmatprep.subr.mxu0 0.0
    %141 = vmatpush1.xpose.msra.mxu0 0.0
    %142 = vmatprep.subr.mxu0 0.0
    %143 = vmatpush1.xpose.msra.mxu0 0.0
    %144 = vmatprep.subr.mxu0 0.0
    %145 = vmatpush1.xpose.msra.mxu0 0.0
    %146 = vmatprep.subr.mxu0 0.0
    %147 = vmatpush1.xpose.msra.mxu0 0.0
    %148 = vmatprep.subr.mxu0 0.0
    %149 = vmatpush1.xpose.msra.mxu0 0.0
    %150 = vmatprep.subr.mxu0 0.0
    %151 = vmatpush1.xpose.msra.mxu0 0.0
    %152 = vmatprep.subr.mxu0 0.0
    %153 = vmatpush1.xpose.msra.mxu0 0.0
    %154 = vmatprep.subr.mxu0 0.0
    %155 = vmatpush1.xpose.msra.mxu0 0.0
    %156 = vmatprep.subr.mxu0 0.0
    %157 = vmatpush1.xpose.msra.mxu0 0.0
    %158 = vmatprep.subr.mxu0 0.0
    %159 = vmatpush1.xpose.msra.mxu0 0.0
    %160 = vmatprep.subr.mxu0 0.0
    %161 = vmatpush1.xpose.msra.mxu0 0.0
    %162 = vmatprep.subr.mxu0 0.0
    %163 = vmatpush1.xpose.msra.mxu0 0.0
    %164 = vmatprep.subr.mxu0 0.0
    %165 = vmatpush1.xpose.msra.mxu0 0.0
    %166 = vmatprep.subr.mxu0 0.0
    %167 = vmatpush1.xpose.msra.mxu0 0.0
    %168 = vmatprep.subr.mxu0 0.0
    %169 = vmatpush1.xpose.msra.mxu0 0.0
    %170 = vmatprep.subr.mxu0 0.0
    %171 = vmatpush1.xpose.msra.mxu0 0.0
    %172 = vmatprep.subr.mxu0 0.0
    %173 = vmatpush1.xpose.msra.mxu0 0.0
    %174 = vmatprep.subr.mxu0 0.0
    %175 = vmatpush1.xpose.msra.mxu0 0.0
    %176 = vmatprep.subr.mxu0 0.0
    %177 = vmatpush1.xpose.msra.mxu0 0.0
    %178 = vmatprep.subr.mxu0 0.0
    %179 = vmatpush1.xpose.msra.mxu0 0.0
    %180 = vmatprep.subr.mxu0 0.0
    %181 = vmatpush1.xpose.msra.mxu0 0.0
    %182 = vmatprep.subr.mxu0 0.0
    %183 = vmatpush1.xpose.msra.mxu0 0.0
    %184 = vmatprep.subr.mxu0 0.0
    %185 = vmatpush1.xpose.msra.mxu0 0.0
    %186 = vmatprep.subr.mxu0 0.0
    %187 = vmatpush1.xpose.msra.mxu0 0.0
    %188 = vmatprep.subr.mxu0 0.0
    %189 = vmatpush1.xpose.msra.mxu0 0.0
    %190 = vmatprep.subr.mxu0 0.0
    %191 = vmatpush1.xpose.msra.mxu0 0.0
    %192 = vmatprep.subr.mxu0 0.0
    %193 = vmatpush1.xpose.msra.mxu0 0.0
    %194 = vmatprep.mubr.f32.mxu0 0.0
    %v195 = vand.u32 %v106, 4294901760
    %v196 = vsub.f32 %v106, %v195
    %v197 = vand.u32 %v196, 4294901760
    %v198 = vsub.f32 %v196, %v197
    %v199 = vand.u32 %v198, 4294901760
    %200 = vmatmul.mubr.f32.gmra.mrb[0].mxu0 %v199
    %v201 = vpop.f32.mrb[0].mxu0
    %v202 = vadd.f32 0.0, %v201
    %v203 = vpop.f32.mrb[0].mxu0
    %204 = vmatprep.mubr.f32.mxu0 0.0
    %v205 = vand.u32 %v107, 4294901760
    %v206 = vsub.f32 %v107, %v205
    %v207 = vand.u32 %v206, 4294901760
    %v208 = vsub.f32 %v206, %v207
    %v209 = vand.u32 %v208, 4294901760
    %210 = vmatmul.mubr.f32.gmra.mrb[0].mxu0 %v209
    %v211 = vpop.f32.mrb[0].mxu0
    %v212 = vadd.f32 0.0, %v211
    %v213 = vpop.f32.mrb[0].mxu0
    %214 = vdwg.mxu0
    %215 = vmatprep.subr.mxu0 0.0
    %v216 = vand.u32 %v122, 4294901760
    %v217 = vsub.f32 %v122, %v216
    %v218 = vand.u32 %v217, 4294901760
    %v219 = vsub.f32 %v217, %v218
    %v220 = vand.u32 %v219, 4294901760
    %221 = vmatpush1.xpose.msra.mxu0 %v220
    %222 = vmatprep.subr.mxu0 0.0
    %v223 = vand.u32 %v123, 4294901760
    %v224 = vsub.f32 %v123, %v223
    %v225 = vand.u32 %v224, 4294901760
    %v226 = vsub.f32 %v224, %v225
    %v227 = vand.u32 %v226, 4294901760
    %228 = vmatpush1.xpose.msra.mxu0 %v227
    %229 = vmatprep.subr.mxu0 0.0
    %v230 = vand.u32 %v124, 4294901760
    %v231 = vsub.f32 %v124, %v230
    %v232 = vand.u32 %v231, 4294901760
    %v233 = vsub.f32 %v231, %v232
    %v234 = vand.u32 %v233, 4294901760
    %235 = vmatpush1.xpose.msra.mxu0 %v234
    %236 = vmatprep.subr.mxu0 0.0
    %v237 = vand.u32 %v125, 4294901760
    %v238 = vsub.f32 %v125, %v237
    %v239 = vand.u32 %v238, 4294901760
    %v240 = vsub.f32 %v238, %v239
    %v241 = vand.u32 %v240, 4294901760
    %242 = vmatpush1.xpose.msra.mxu0 %v241
    %243 = vmatprep.subr.mxu0 0.0
    %244 = vmatpush1.xpose.msra.mxu0 0.0
    %245 = vmatprep.subr.mxu0 0.0
    %246 = vmatpush1.xpose.msra.mxu0 0.0
    %247 = vmatprep.subr.mxu0 0.0
    %248 = vmatpush1.xpose.msra.mxu0 0.0
    %249 = vmatprep.subr.mxu0 0.0
    %250 = vmatpush1.xpose.msra.mxu0 0.0
    %251 = vmatprep.subr.mxu0 0.0
    %252 = vmatpush1.xpose.msra.mxu0 0.0
    %253 = vmatprep.subr.mxu0 0.0
    %254 = vmatpush1.xpose.msra.mxu0 0.0
    %255 = vmatprep.subr.mxu0 0.0
    %256 = vmatpush1.xpose.msra.mxu0 0.0
    %257 = vmatprep.subr.mxu0 0.0
    %258 = vmatpush1.xpose.msra.mxu0 0.0
    %259 = vmatprep.subr.mxu0 0.0
    %260 = vmatpush1.xpose.msra.mxu0 0.0
    %261 = vmatprep.subr.mxu0 0.0
    %262 = vmatpush1.xpose.msra.mxu0 0.0
    %263 = vmatprep.subr.mxu0 0.0
    %264 = vmatpush1.xpose.msra.mxu0 0.0
    %265 = vmatprep.subr.mxu0 0.0
    %266 = vmatpush1.xpose.msra.mxu0 0.0
    %267 = vmatprep.subr.mxu0 0.0
    %268 = vmatpush1.xpose.msra.mxu0 0.0
    %269 = vmatprep.subr.mxu0 0.0
    %270 = vmatpush1.xpose.msra.mxu0 0.0
    %271 = vmatprep.subr.mxu0 0.0
    %272 = vmatpush1.xpose.msra.mxu0 0.0
    %273 = vmatprep.subr.mxu0 0.0
    %274 = vmatpush1.xpose.msra.mxu0 0.0
    %275 = vmatprep.subr.mxu0 0.0
    %276 = vmatpush1.xpose.msra.mxu0 0.0
    %277 = vmatprep.subr.mxu0 0.0
    %278 = vmatpush1.xpose.msra.mxu0 0.0
    %279 = vmatprep.subr.mxu0 0.0
    %280 = vmatpush1.xpose.msra.mxu0 0.0
    %281 = vmatprep.subr.mxu0 0.0
    %282 = vmatpush1.xpose.msra.mxu0 0.0
    %283 = vmatprep.subr.mxu0 0.0
    %284 = vmatpush1.xpose.msra.mxu0 0.0
    %285 = vmatprep.subr.mxu0 0.0
    %286 = vmatpush1.xpose.msra.mxu0 0.0
    %287 = vmatprep.subr.mxu0 0.0
    %288 = vmatpush1.xpose.msra.mxu0 0.0
    %289 = vmatprep.subr.mxu0 0.0
    %290 = vmatpush1.xpose.msra.mxu0 0.0
    %291 = vmatprep.subr.mxu0 0.0
    %292 = vmatpush1.xpose.msra.mxu0 0.0
    %293 = vmatprep.subr.mxu0 0.0
    %294 = vmatpush1.xpose.msra.mxu0 0.0
    %295 = vmatprep.subr.mxu0 0.0
    %296 = vmatpush1.xpose.msra.mxu0 0.0
    %297 = vmatprep.subr.mxu0 0.0
    %298 = vmatpush1.xpose.msra.mxu0 0.0
    %299 = vmatprep.mubr.f32.mxu0 0.0
    %v300 = vand.u32 %v106, 4294901760
    %301 = vmatmul.mubr.f32.gmra.mrb[0].mxu0 %v300
    %v302 = vpop.f32.mrb[0].mxu0
    %v303 = vadd.f32 %v202, %v302
    %v304 = vpop.f32.mrb[0].mxu0
    %305 = vmatprep.mubr.f32.mxu0 0.0
    %v306 = vand.u32 %v107, 4294901760
    %307 = vmatmul.mubr.f32.gmra.mrb[0].mxu0 %v306
    %v308 = vpop.f32.mrb[0].mxu0
    %v309 = vadd.f32 %v212, %v308
    %v310 = vpop.f32.mrb[0].mxu0
    %311 = vdwg.mxu0
    %312 = vmatprep.subr.mxu0 0.0
    %v313 = vand.u32 %v122, 4294901760
    %v314 = vsub.f32 %v122, %v313
    %315 = vmatpush1.xpose.msra.mxu0 %v314
    %316 = vmatprep.subr.mxu0 0.0
    %v317 = vand.u32 %v123, 4294901760
    %v318 = vsub.f32 %v123, %v317
    %319 = vmatpush1.xpose.msra.mxu0 %v318
    %320 = vmatprep.subr.mxu0 0.0
    %v321 = vand.u32 %v124, 4294901760
    %v322 = vsub.f32 %v124, %v321
    %323 = vmatpush1.xpose.msra.mxu0 %v322
    %324 = vmatprep.subr.mxu0 0.0
    %v325 = vand.u32 %v125, 4294901760
    %v326 = vsub.f32 %v125, %v325
    %327 = vmatpush1.xpose.msra.mxu0 %v326
    %328 = vmatprep.subr.mxu0 0.0
    %329 = vmatpush1.xpose.msra.mxu0 0.0
    %330 = vmatprep.subr.mxu0 0.0
    %331 = vmatpush1.xpose.msra.mxu0 0.0
    %332 = vmatprep.subr.mxu0 0.0
    %333 = vmatpush1.xpose.msra.mxu0 0.0
    %334 = vmatprep.subr.mxu0 0.0
    %335 = vmatpush1.xpose.msra.mxu0 0.0
    %336 = vmatprep.subr.mxu0 0.0
    %337 = vmatpush1.xpose.msra.mxu0 0.0
    %338 = vmatprep.subr.mxu0 0.0
    %339 = vmatpush1.xpose.msra.mxu0 0.0
    %340 = vmatprep.subr.mxu0 0.0
    %341 = vmatpush1.xpose.msra.mxu0 0.0
    %342 = vmatprep.subr.mxu0 0.0
    %343 = vmatpush1.xpose.msra.mxu0 0.0
    %344 = vmatprep.subr.mxu0 0.0
    %345 = vmatpush1.xpose.msra.mxu0 0.0
    %346 = vmatprep.subr.mxu0 0.0
    %347 = vmatpush1.xpose.msra.mxu0 0.0
    %348 = vmatprep.subr.mxu0 0.0
    %349 = vmatpush1.xpose.msra.mxu0 0.0
    %350 = vmatprep.subr.mxu0 0.0
    %351 = vmatpush1.xpose.msra.mxu0 0.0
    %352 = vmatprep.subr.mxu0 0.0
    %353 = vmatpush1.xpose.msra.mxu0 0.0
    %354 = vmatprep.subr.mxu0 0.0
    %355 = vmatpush1.xpose.msra.mxu0 0.0
    %356 = vmatprep.subr.mxu0 0.0
    %357 = vmatpush1.xpose.msra.mxu0 0.0
    %358 = vmatprep.subr.mxu0 0.0
    %359 = vmatpush1.xpose.msra.mxu0 0.0
    %360 = vmatprep.subr.mxu0 0.0
    %361 = vmatpush1.xpose.msra.mxu0 0.0
    %362 = vmatprep.subr.mxu0 0.0
    %363 = vmatpush1.xpose.msra.mxu0 0.0
    %364 = vmatprep.subr.mxu0 0.0
    %365 = vmatpush1.xpose.msra.mxu0 0.0
    %366 = vmatprep.subr.mxu0 0.0
    %367 = vmatpush1.xpose.msra.mxu0 0.0
    %368 = vmatprep.subr.mxu0 0.0
    %369 = vmatpush1.xpose.msra.mxu0 0.0
    %370 = vmatprep.subr.mxu0 0.0
    %371 = vmatpush1.xpose.msra.mxu0 0.0
    %372 = vmatprep.subr.mxu0 0.0
    %373 = vmatpush1.xpose.msra.mxu0 0.0
    %374 = vmatprep.subr.mxu0 0.0
    %375 = vmatpush1.xpose.msra.mxu0 0.0
    %376 = vmatprep.subr.mxu0 0.0
    %377 = vmatpush1.xpose.msra.mxu0 0.0
    %378 = vmatprep.subr.mxu0 0.0
    %379 = vmatpush1.xpose.msra.mxu0 0.0
    %380 = vmatprep.subr.mxu0 0.0
    %381 = vmatpush1.xpose.msra.mxu0 0.0
    %382 = vmatprep.subr.mxu0 0.0
    %383 = vmatpush1.xpose.msra.mxu0 0.0
    %384 = vmatprep.mubr.f32.mxu0 0.0
    %v385 = vand.u32 %v106, 4294901760
    %v386 = vsub.f32 %v106, %v385
    %387 = vmatmul.mubr.f32.gmra.mrb[0].mxu0 %v386
    %v388 = vpop.f32.mrb[0].mxu0
    %v389 = vadd.f32 %v303, %v388
    %v390 = vpop.f32.mrb[0].mxu0
    %391 = vmatprep.mubr.f32.mxu0 0.0
    %v392 = vand.u32 %v107, 4294901760
    %v393 = vsub.f32 %v107, %v392
    %394 = vmatmul.mubr.f32.gmra.mrb[0].mxu0 %v393
    %v395 = vpop.f32.mrb[0].mxu0
    %v396 = vadd.f32 %v309, %v395
    %v397 = vpop.f32.mrb[0].mxu0
    %398 = vdwg.mxu0
    %399 = vmatprep.subr.mxu0 0.0
    %v400 = vand.u32 %v122, 4294901760
    %401 = vmatpush1.xpose.msra.mxu0 %v400
    %402 = vmatprep.subr.mxu0 0.0
    %v403 = vand.u32 %v123, 4294901760
    %404 = vmatpush1.xpose.msra.mxu0 %v403
    %405 = vmatprep.subr.mxu0 0.0
    %v406 = vand.u32 %v124, 4294901760
    %407 = vmatpush1.xpose.msra.mxu0 %v406
    %408 = vmatprep.subr.mxu0 0.0
    %v409 = vand.u32 %v125, 4294901760
    %410 = vmatpush1.xpose.msra.mxu0 %v409
    %411 = vmatprep.subr.mxu0 0.0
    %412 = vmatpush1.xpose.msra.mxu0 0.0
    %413 = vmatprep.subr.mxu0 0.0
    %414 = vmatpush1.xpose.msra.mxu0 0.0
    %415 = vmatprep.subr.mxu0 0.0
    %416 = vmatpush1.xpose.msra.mxu0 0.0
    %417 = vmatprep.subr.mxu0 0.0
    %418 = vmatpush1.xpose.msra.mxu0 0.0
    %419 = vmatprep.subr.mxu0 0.0
    %420 = vmatpush1.xpose.msra.mxu0 0.0
    %421 = vmatprep.subr.mxu0 0.0
    %422 = vmatpush1.xpose.msra.mxu0 0.0
    %423 = vmatprep.subr.mxu0 0.0
    %424 = vmatpush1.xpose.msra.mxu0 0.0
    %425 = vmatprep.subr.mxu0 0.0
    %426 = vmatpush1.xpose.msra.mxu0 0.0
    %427 = vmatprep.subr.mxu0 0.0
    %428 = vmatpush1.xpose.msra.mxu0 0.0
    %429 = vmatprep.subr.mxu0 0.0
    %430 = vmatpush1.xpose.msra.mxu0 0.0
    %431 = vmatprep.subr.mxu0 0.0
    %432 = vmatpush1.xpose.msra.mxu0 0.0
    %433 = vmatprep.subr.mxu0 0.0
    %434 = vmatpush1.xpose.msra.mxu0 0.0
    %435 = vmatprep.subr.mxu0 0.0
    %436 = vmatpush1.xpose.msra.mxu0 0.0
    %437 = vmatprep.subr.mxu0 0.0
    %438 = vmatpush1.xpose.msra.mxu0 0.0
    %439 = vmatprep.subr.mxu0 0.0
    %440 = vmatpush1.xpose.msra.mxu0 0.0
    %441 = vmatprep.subr.mxu0 0.0
    %442 = vmatpush1.xpose.msra.mxu0 0.0
    %443 = vmatprep.subr.mxu0 0.0
    %444 = vmatpush1.xpose.msra.mxu0 0.0
    %445 = vmatprep.subr.mxu0 0.0
    %446 = vmatpush1.xpose.msra.mxu0 0.0
    %447 = vmatprep.subr.mxu0 0.0
    %448 = vmatpush1.xpose.msra.mxu0 0.0
    %449 = vmatprep.subr.mxu0 0.0
    %450 = vmatpush1.xpose.msra.mxu0 0.0
    %451 = vmatprep.subr.mxu0 0.0
    %452 = vmatpush1.xpose.msra.mxu0 0.0
    %453 = vmatprep.subr.mxu0 0.0
    %454 = vmatpush1.xpose.msra.mxu0 0.0
    %455 = vmatprep.subr.mxu0 0.0
    %456 = vmatpush1.xpose.msra.mxu0 0.0
    %457 = vmatprep.subr.mxu0 0.0
    %458 = vmatpush1.xpose.msra.mxu0 0.0
    %459 = vmatprep.subr.mxu0 0.0
    %460 = vmatpush1.xpose.msra.mxu0 0.0
    %461 = vmatprep.subr.mxu0 0.0
    %462 = vmatpush1.xpose.msra.mxu0 0.0
    %463 = vmatprep.subr.mxu0 0.0
    %464 = vmatpush1.xpose.msra.mxu0 0.0
    %465 = vmatprep.subr.mxu0 0.0
    %466 = vmatpush1.xpose.msra.mxu0 0.0
    %467 = vmatprep.mubr.f32.mxu0 0.0
    %v468 = vand.u32 %v106, 4294901760
    %v469 = vsub.f32 %v106, %v468
    %v470 = vand.u32 %v469, 4294901760
    %471 = vmatmul.mubr.f32.gmra.mrb[0].mxu0 %v470
    %v472 = vpop.f32.mrb[0].mxu0
    %v473 = vadd.f32 %v389, %v472
    %v474 = vpop.f32.mrb[0].mxu0
    %475 = vmatprep.mubr.f32.mxu0 0.0
    %v476 = vand.u32 %v107, 4294901760
    %v477 = vsub.f32 %v107, %v476
    %v478 = vand.u32 %v477, 4294901760
    %479 = vmatmul.mubr.f32.gmra.mrb[0].mxu0 %v478
    %v480 = vpop.f32.mrb[0].mxu0
    %v481 = vadd.f32 %v396, %v480
    %v482 = vpop.f32.mrb[0].mxu0
    %483 = vdwg.mxu0
    %484 = vmatprep.subr.mxu0 0.0
    %v485 = vand.u32 %v122, 4294901760
    %v486 = vsub.f32 %v122, %v485
    %v487 = vand.u32 %v486, 4294901760
    %488 = vmatpush1.xpose.msra.mxu0 %v487
    %489 = vmatprep.subr.mxu0 0.0
    %v490 = vand.u32 %v123, 4294901760
    %v491 = vsub.f32 %v123, %v490
    %v492 = vand.u32 %v491, 4294901760
    %493 = vmatpush1.xpose.msra.mxu0 %v492
    %494 = vmatprep.subr.mxu0 0.0
    %v495 = vand.u32 %v124, 4294901760
    %v496 = vsub.f32 %v124, %v495
    %v497 = vand.u32 %v496, 4294901760
    %498 = vmatpush1.xpose.msra.mxu0 %v497
    %499 = vmatprep.subr.mxu0 0.0
    %v500 = vand.u32 %v125, 4294901760
    %v501 = vsub.f32 %v125, %v500
    %v502 = vand.u32 %v501, 4294901760
    %503 = vmatpush1.xpose.msra.mxu0 %v502
    %504 = vmatprep.subr.mxu0 0.0
    %505 = vmatpush1.xpose.msra.mxu0 0.0
    %506 = vmatprep.subr.mxu0 0.0
    %507 = vmatpush1.xpose.msra.mxu0 0.0
    %508 = vmatprep.subr.mxu0 0.0
    %509 = vmatpush1.xpose.msra.mxu0 0.0
    %510 = vmatprep.subr.mxu0 0.0
    %511 = vmatpush1.xpose.msra.mxu0 0.0
    %512 = vmatprep.subr.mxu0 0.0
    %513 = vmatpush1.xpose.msra.mxu0 0.0
    %514 = vmatprep.subr.mxu0 0.0
    %515 = vmatpush1.xpose.msra.mxu0 0.0
    %516 = vmatprep.subr.mxu0 0.0
    %517 = vmatpush1.xpose.msra.mxu0 0.0
    %518 = vmatprep.subr.mxu0 0.0
    %519 = vmatpush1.xpose.msra.mxu0 0.0
    %520 = vmatprep.subr.mxu0 0.0
    %521 = vmatpush1.xpose.msra.mxu0 0.0
    %522 = vmatprep.subr.mxu0 0.0
    %523 = vmatpush1.xpose.msra.mxu0 0.0
    %524 = vmatprep.subr.mxu0 0.0
    %525 = vmatpush1.xpose.msra.mxu0 0.0
    %526 = vmatprep.subr.mxu0 0.0
    %527 = vmatpush1.xpose.msra.mxu0 0.0
    %528 = vmatprep.subr.mxu0 0.0
    %529 = vmatpush1.xpose.msra.mxu0 0.0
    %530 = vmatprep.subr.mxu0 0.0
    %531 = vmatpush1.xpose.msra.mxu0 0.0
    %532 = vmatprep.subr.mxu0 0.0
    %533 = vmatpush1.xpose.msra.mxu0 0.0
    %534 = vmatprep.subr.mxu0 0.0
    %535 = vmatpush1.xpose.msra.mxu0 0.0
    %536 = vmatprep.subr.mxu0 0.0
    %537 = vmatpush1.xpose.msra.mxu0 0.0
    %538 = vmatprep.subr.mxu0 0.0
    %539 = vmatpush1.xpose.msra.mxu0 0.0
    %540 = vmatprep.subr.mxu0 0.0
    %541 = vmatpush1.xpose.msra.mxu0 0.0
    %542 = vmatprep.subr.mxu0 0.0
    %543 = vmatpush1.xpose.msra.mxu0 0.0
    %544 = vmatprep.subr.mxu0 0.0
    %545 = vmatpush1.xpose.msra.mxu0 0.0
    %546 = vmatprep.subr.mxu0 0.0
    %547 = vmatpush1.xpose.msra.mxu0 0.0
    %548 = vmatprep.subr.mxu0 0.0
    %549 = vmatpush1.xpose.msra.mxu0 0.0
    %550 = vmatprep.subr.mxu0 0.0
    %551 = vmatpush1.xpose.msra.mxu0 0.0
    %552 = vmatprep.subr.mxu0 0.0
    %553 = vmatpush1.xpose.msra.mxu0 0.0
    %554 = vmatprep.subr.mxu0 0.0
    %555 = vmatpush1.xpose.msra.mxu0 0.0
    %556 = vmatprep.subr.mxu0 0.0
    %557 = vmatpush1.xpose.msra.mxu0 0.0
    %558 = vmatprep.subr.mxu0 0.0
    %559 = vmatpush1.xpose.msra.mxu0 0.0
    %560 = vmatprep.mubr.f32.mxu0 0.0
    %v561 = vand.u32 %v106, 4294901760
    %562 = vmatmul.mubr.f32.gmra.mrb[0].mxu0 %v561
    %v563 = vpop.f32.mrb[0].mxu0
    %v564 = vadd.f32 %v473, %v563
    %v565 = vpop.f32.mrb[0].mxu0
    %566 = vmatprep.mubr.f32.mxu0 0.0
    %v567 = vand.u32 %v107, 4294901760
    %568 = vmatmul.mubr.f32.gmra.mrb[0].mxu0 %v567
    %v569 = vpop.f32.mrb[0].mxu0
    %v570 = vadd.f32 %v481, %v569
    %v571 = vpop.f32.mrb[0].mxu0
    %572 = vdwg.mxu0
    %573 = vmatprep.subr.mxu0 0.0
    %v574 = vand.u32 %v122, 4294901760
    %575 = vmatpush1.xpose.msra.mxu0 %v574
    %576 = vmatprep.subr.mxu0 0.0
    %v577 = vand.u32 %v123, 4294901760
    %578 = vmatpush1.xpose.msra.mxu0 %v577
    %579 = vmatprep.subr.mxu0 0.0
    %v580 = vand.u32 %v124, 4294901760
    %581 = vmatpush1.xpose.msra.mxu0 %v580
    %582 = vmatprep.subr.mxu0 0.0
    %v583 = vand.u32 %v125, 4294901760
    %584 = vmatpush1.xpose.msra.mxu0 %v583
    %585 = vmatprep.subr.mxu0 0.0
    %586 = vmatpush1.xpose.msra.mxu0 0.0
    %587 = vmatprep.subr.mxu0 0.0
    %588 = vmatpush1.xpose.msra.mxu0 0.0
    %589 = vmatprep.subr.mxu0 0.0
    %590 = vmatpush1.xpose.msra.mxu0 0.0
    %591 = vmatprep.subr.mxu0 0.0
    %592 = vmatpush1.xpose.msra.mxu0 0.0
    %593 = vmatprep.subr.mxu0 0.0
    %594 = vmatpush1.xpose.msra.mxu0 0.0
    %595 = vmatprep.subr.mxu0 0.0
    %596 = vmatpush1.xpose.msra.mxu0 0.0
    %597 = vmatprep.subr.mxu0 0.0
    %598 = vmatpush1.xpose.msra.mxu0 0.0
    %599 = vmatprep.subr.mxu0 0.0
    %600 = vmatpush1.xpose.msra.mxu0 0.0
    %601 = vmatprep.subr.mxu0 0.0
    %602 = vmatpush1.xpose.msra.mxu0 0.0
    %603 = vmatprep.subr.mxu0 0.0
    %604 = vmatpush1.xpose.msra.mxu0 0.0
    %605 = vmatprep.subr.mxu0 0.0
    %606 = vmatpush1.xpose.msra.mxu0 0.0
    %607 = vmatprep.subr.mxu0 0.0
    %608 = vmatpush1.xpose.msra.mxu0 0.0
    %609 = vmatprep.subr.mxu0 0.0
    %610 = vmatpush1.xpose.msra.mxu0 0.0
    %611 = vmatprep.subr.mxu0 0.0
    %612 = vmatpush1.xpose.msra.mxu0 0.0
    %613 = vmatprep.subr.mxu0 0.0
    %614 = vmatpush1.xpose.msra.mxu0 0.0
    %615 = vmatprep.subr.mxu0 0.0
    %616 = vmatpush1.xpose.msra.mxu0 0.0
    %617 = vmatprep.subr.mxu0 0.0
    %618 = vmatpush1.xpose.msra.mxu0 0.0
    %619 = vmatprep.subr.mxu0 0.0
    %620 = vmatpush1.xpose.msra.mxu0 0.0
    %621 = vmatprep.subr.mxu0 0.0
    %622 = vmatpush1.xpose.msra.mxu0 0.0
    %623 = vmatprep.subr.mxu0 0.0
    %624 = vmatpush1.xpose.msra.mxu0 0.0
    %625 = vmatprep.subr.mxu0 0.0
    %626 = vmatpush1.xpose.msra.mxu0 0.0
    %627 = vmatprep.subr.mxu0 0.0
    %628 = vmatpush1.xpose.msra.mxu0 0.0
    %629 = vmatprep.subr.mxu0 0.0
    %630 = vmatpush1.xpose.msra.mxu0 0.0
    %631 = vmatprep.subr.mxu0 0.0
    %632 = vmatpush1.xpose.msra.mxu0 0.0
    %633 = vmatprep.subr.mxu0 0.0
    %634 = vmatpush1.xpose.msra.mxu0 0.0
    %635 = vmatprep.subr.mxu0 0.0
    %636 = vmatpush1.xpose.msra.mxu0 0.0
    %637 = vmatprep.subr.mxu0 0.0
    %638 = vmatpush1.xpose.msra.mxu0 0.0
    %639 = vmatprep.subr.mxu0 0.0
    %640 = vmatpush1.xpose.msra.mxu0 0.0
    %641 = vmatprep.mubr.f32.mxu0 0.0
    %v642 = vand.u32 %v106, 4294901760
    %643 = vmatmul.mubr.f32.gmra.mrb[0].mxu0 %v642
    %v644 = vpop.f32.mrb[0].mxu0
    %v645 = vadd.f32 %v564, %v644
    %v646 = vpop.f32.mrb[0].mxu0
    %647 = vmatprep.mubr.f32.mxu0 0.0
    %v648 = vand.u32 %v107, 4294901760
    %649 = vmatmul.mubr.f32.gmra.mrb[0].mxu0 %v648
    %v650 = vpop.f32.mrb[0].mxu0
    %v651 = vadd.f32 %v570, %v650
    %v652 = vpop.f32.mrb[0].mxu0
    %653 = vdwg.mxu0
    %654 = vmatprep.subr.mxu0 0.0
    %v655 = vand.u32 %v122, 4294901760
    %656 = vmatpush1.xpose.msra.mxu0 %v655
    %657 = vmatprep.subr.mxu0 0.0
    %v658 = vand.u32 %v123, 4294901760
    %659 = vmatpush1.xpose.msra.mxu0 %v658
    %660 = vmatprep.subr.mxu0 0.0
    %v661 = vand.u32 %v124, 4294901760
    %662 = vmatpush1.xpose.msra.mxu0 %v661
    %663 = vmatprep.subr.mxu0 0.0
    %v664 = vand.u32 %v125, 4294901760
    %665 = vmatpush1.xpose.msra.mxu0 %v664
    %666 = vmatprep.subr.mxu0 0.0
    %667 = vmatpush1.xpose.msra.mxu0 0.0
    %668 = vmatprep.subr.mxu0 0.0
    %669 = vmatpush1.xpose.msra.mxu0 0.0
    %670 = vmatprep.subr.mxu0 0.0
    %671 = vmatpush1.xpose.msra.mxu0 0.0
    %672 = vmatprep.subr.mxu0 0.0
    %673 = vmatpush1.xpose.msra.mxu0 0.0
    %674 = vmatprep.subr.mxu0 0.0
    %675 = vmatpush1.xpose.msra.mxu0 0.0
    %676 = vmatprep.subr.mxu0 0.0
    %677 = vmatpush1.xpose.msra.mxu0 0.0
    %678 = vmatprep.subr.mxu0 0.0
    %679 = vmatpush1.xpose.msra.mxu0 0.0
    %680 = vmatprep.subr.mxu0 0.0
    %681 = vmatpush1.xpose.msra.mxu0 0.0
    %682 = vmatprep.subr.mxu0 0.0
    %683 = vmatpush1.xpose.msra.mxu0 0.0
    %684 = vmatprep.subr.mxu0 0.0
    %685 = vmatpush1.xpose.msra.mxu0 0.0
    %686 = vmatprep.subr.mxu0 0.0
    %687 = vmatpush1.xpose.msra.mxu0 0.0
    %688 = vmatprep.subr.mxu0 0.0
    %689 = vmatpush1.xpose.msra.mxu0 0.0
    %690 = vmatprep.subr.mxu0 0.0
    %691 = vmatpush1.xpose.msra.mxu0 0.0
    %692 = vmatprep.subr.mxu0 0.0
    %693 = vmatpush1.xpose.msra.mxu0 0.0
    %694 = vmatprep.subr.mxu0 0.0
    %695 = vmatpush1.xpose.msra.mxu0 0.0
    %696 = vmatprep.subr.mxu0 0.0
    %697 = vmatpush1.xpose.msra.mxu0 0.0
    %698 = vmatprep.subr.mxu0 0.0
    %699 = vmatpush1.xpose.msra.mxu0 0.0
    %700 = vmatprep.subr.mxu0 0.0
    %701 = vmatpush1.xpose.msra.mxu0 0.0
    %702 = vmatprep.subr.mxu0 0.0
    %703 = vmatpush1.xpose.msra.mxu0 0.0
    %704 = vmatprep.subr.mxu0 0.0
    %705 = vmatpush1.xpose.msra.mxu0 0.0
    %706 = vmatprep.subr.mxu0 0.0
    %707 = vmatpush1.xpose.msra.mxu0 0.0
    %708 = vmatprep.subr.mxu0 0.0
    %709 = vmatpush1.xpose.msra.mxu0 0.0
    %710 = vmatprep.subr.mxu0 0.0
    %711 = vmatpush1.xpose.msra.mxu0 0.0
    %712 = vmatprep.subr.mxu0 0.0
    %713 = vmatpush1.xpose.msra.mxu0 0.0
    %714 = vmatprep.subr.mxu0 0.0
    %715 = vmatpush1.xpose.msra.mxu0 0.0
    %716 = vmatprep.subr.mxu0 0.0
    %717 = vmatpush1.xpose.msra.mxu0 0.0
    %718 = vmatprep.subr.mxu0 0.0
    %719 = vmatpush1.xpose.msra.mxu0 0.0
    %720 = vmatprep.subr.mxu0 0.0
    %721 = vmatpush1.xpose.msra.mxu0 0.0
    %722 = vmatprep.mubr.f32.mxu0 0.0
    %v723 = vand.u32 %v120, 4294901760
    %v724 = vsub.f32 %v120, %v723
    %v725 = vand.u32 %v724, 4294901760
    %v726 = vsub.f32 %v724, %v725
    %v727 = vand.u32 %v726, 4294901760
    %728 = vmatmul.mubr.f32.gmra.mrb[0].mxu0 %v727
    %v729 = vpop.f32.mrb[0].mxu0
    %v730 = vadd.f32 0.0, %v729
    %v731 = vpop.f32.mrb[0].mxu0
    %732 = vmatprep.mubr.f32.mxu0 0.0
    %v733 = vand.u32 %v121, 4294901760
    %v734 = vsub.f32 %v121, %v733
    %v735 = vand.u32 %v734, 4294901760
    %v736 = vsub.f32 %v734, %v735
    %v737 = vand.u32 %v736, 4294901760
    %738 = vmatmul.mubr.f32.gmra.mrb[0].mxu0 %v737
    %v739 = vpop.f32.mrb[0].mxu0
    %v740 = vadd.f32 0.0, %v739
    %v741 = vpop.f32.mrb[0].mxu0
    %742 = vdwg.mxu0
    %743 = vmatprep.subr.mxu0 0.0
    %v744 = vand.u32 %v122, 4294901760
    %v745 = vsub.f32 %v122, %v744
    %v746 = vand.u32 %v745, 4294901760
    %v747 = vsub.f32 %v745, %v746
    %v748 = vand.u32 %v747, 4294901760
    %749 = vmatpush1.xpose.msra.mxu0 %v748
    %750 = vmatprep.subr.mxu0 0.0
    %v751 = vand.u32 %v123, 4294901760
    %v752 = vsub.f32 %v123, %v751
    %v753 = vand.u32 %v752, 4294901760
    %v754 = vsub.f32 %v752, %v753
    %v755 = vand.u32 %v754, 4294901760
    %756 = vmatpush1.xpose.msra.mxu0 %v755
    %757 = vmatprep.subr.mxu0 0.0
    %v758 = vand.u32 %v124, 4294901760
    %v759 = vsub.f32 %v124, %v758
    %v760 = vand.u32 %v759, 4294901760
    %v761 = vsub.f32 %v759, %v760
    %v762 = vand.u32 %v761, 4294901760
    %763 = vmatpush1.xpose.msra.mxu0 %v762
    %764 = vmatprep.subr.mxu0 0.0
    %v765 = vand.u32 %v125, 4294901760
    %v766 = vsub.f32 %v125, %v765
    %v767 = vand.u32 %v766, 4294901760
    %v768 = vsub.f32 %v766, %v767
    %v769 = vand.u32 %v768, 4294901760
    %770 = vmatpush1.xpose.msra.mxu0 %v769
    %771 = vmatprep.subr.mxu0 0.0
    %772 = vmatpush1.xpose.msra.mxu0 0.0
    %773 = vmatprep.subr.mxu0 0.0
    %774 = vmatpush1.xpose.msra.mxu0 0.0
    %775 = vmatprep.subr.mxu0 0.0
    %776 = vmatpush1.xpose.msra.mxu0 0.0
    %777 = vmatprep.subr.mxu0 0.0
    %778 = vmatpush1.xpose.msra.mxu0 0.0
    %779 = vmatprep.subr.mxu0 0.0
    %780 = vmatpush1.xpose.msra.mxu0 0.0
    %781 = vmatprep.subr.mxu0 0.0
    %782 = vmatpush1.xpose.msra.mxu0 0.0
    %783 = vmatprep.subr.mxu0 0.0
    %784 = vmatpush1.xpose.msra.mxu0 0.0
    %785 = vmatprep.subr.mxu0 0.0
    %786 = vmatpush1.xpose.msra.mxu0 0.0
    %787 = vmatprep.subr.mxu0 0.0
    %788 = vmatpush1.xpose.msra.mxu0 0.0
    %789 = vmatprep.subr.mxu0 0.0
    %790 = vmatpush1.xpose.msra.mxu0 0.0
    %791 = vmatprep.subr.mxu0 0.0
    %792 = vmatpush1.xpose.msra.mxu0 0.0
    %793 = vmatprep.subr.mxu0 0.0
    %794 = vmatpush1.xpose.msra.mxu0 0.0
    %795 = vmatprep.subr.mxu0 0.0
    %796 = vmatpush1.xpose.msra.mxu0 0.0
    %797 = vmatprep.subr.mxu0 0.0
    %798 = vmatpush1.xpose.msra.mxu0 0.0
    %799 = vmatprep.subr.mxu0 0.0
    %800 = vmatpush1.xpose.msra.mxu0 0.0
    %801 = vmatprep.subr.mxu0 0.0
    %802 = vmatpush1.xpose.msra.mxu0 0.0
    %803 = vmatprep.subr.mxu0 0.0
    %804 = vmatpush1.xpose.msra.mxu0 0.0
    %805 = vmatprep.subr.mxu0 0.0
    %806 = vmatpush1.xpose.msra.mxu0 0.0
    %807 = vmatprep.subr.mxu0 0.0
    %808 = vmatpush1.xpose.msra.mxu0 0.0
    %809 = vmatprep.subr.mxu0 0.0
    %810 = vmatpush1.xpose.msra.mxu0 0.0
    %811 = vmatprep.subr.mxu0 0.0
    %812 = vmatpush1.xpose.msra.mxu0 0.0
    %813 = vmatprep.subr.mxu0 0.0
    %814 = vmatpush1.xpose.msra.mxu0 0.0
    %815 = vmatprep.subr.mxu0 0.0
    %816 = vmatpush1.xpose.msra.mxu0 0.0
    %817 = vmatprep.subr.mxu0 0.0
    %818 = vmatpush1.xpose.msra.mxu0 0.0
    %819 = vmatprep.subr.mxu0 0.0
    %820 = vmatpush1.xpose.msra.mxu0 0.0
    %821 = vmatprep.subr.mxu0 0.0
    %822 = vmatpush1.xpose.msra.mxu0 0.0
    %823 = vmatprep.subr.mxu0 0.0
    %824 = vmatpush1.xpose.msra.mxu0 0.0
    %825 = vmatprep.subr.mxu0 0.0
    %826 = vmatpush1.xpose.msra.mxu0 0.0
    %827 = vmatprep.mubr.f32.mxu0 0.0
    %v828 = vand.u32 %v120, 4294901760
    %829 = vmatmul.mubr.f32.gmra.mrb[0].mxu0 %v828
    %v830 = vpop.f32.mrb[0].mxu0
    %v831 = vadd.f32 %v730, %v830
    %v832 = vpop.f32.mrb[0].mxu0
    %833 = vmatprep.mubr.f32.mxu0 0.0
    %v834 = vand.u32 %v121, 4294901760
    %835 = vmatmul.mubr.f32.gmra.mrb[0].mxu0 %v834
    %v836 = vpop.f32.mrb[0].mxu0
    %v837 = vadd.f32 %v740, %v836
    %v838 = vpop.f32.mrb[0].mxu0
    %839 = vdwg.mxu0
    %840 = vmatprep.subr.mxu0 0.0
    %v841 = vand.u32 %v122, 4294901760
    %v842 = vsub.f32 %v122, %v841
    %843 = vmatpush1.xpose.msra.mxu0 %v842
    %844 = vmatprep.subr.mxu0 0.0
    %v845 = vand.u32 %v123, 4294901760
    %v846 = vsub.f32 %v123, %v845
    %847 = vmatpush1.xpose.msra.mxu0 %v846
    %848 = vmatprep.subr.mxu0 0.0
    %v849 = vand.u32 %v124, 4294901760
    %v850 = vsub.f32 %v124, %v849
    %851 = vmatpush1.xpose.msra.mxu0 %v850
    %852 = vmatprep.subr.mxu0 0.0
    %v853 = vand.u32 %v125, 4294901760
    %v854 = vsub.f32 %v125, %v853
    %855 = vmatpush1.xpose.msra.mxu0 %v854
    %856 = vmatprep.subr.mxu0 0.0
    %857 = vmatpush1.xpose.msra.mxu0 0.0
    %858 = vmatprep.subr.mxu0 0.0
    %859 = vmatpush1.xpose.msra.mxu0 0.0
    %860 = vmatprep.subr.mxu0 0.0
    %861 = vmatpush1.xpose.msra.mxu0 0.0
    %862 = vmatprep.subr.mxu0 0.0
    %863 = vmatpush1.xpose.msra.mxu0 0.0
    %864 = vmatprep.subr.mxu0 0.0
    %865 = vmatpush1.xpose.msra.mxu0 0.0
    %866 = vmatprep.subr.mxu0 0.0
    %867 = vmatpush1.xpose.msra.mxu0 0.0
    %868 = vmatprep.subr.mxu0 0.0
    %869 = vmatpush1.xpose.msra.mxu0 0.0
    %870 = vmatprep.subr.mxu0 0.0
    %871 = vmatpush1.xpose.msra.mxu0 0.0
    %872 = vmatprep.subr.mxu0 0.0
    %873 = vmatpush1.xpose.msra.mxu0 0.0
    %874 = vmatprep.subr.mxu0 0.0
    %875 = vmatpush1.xpose.msra.mxu0 0.0
    %876 = vmatprep.subr.mxu0 0.0
    %877 = vmatpush1.xpose.msra.mxu0 0.0
    %878 = vmatprep.subr.mxu0 0.0
    %879 = vmatpush1.xpose.msra.mxu0 0.0
    %880 = vmatprep.subr.mxu0 0.0
    %881 = vmatpush1.xpose.msra.mxu0 0.0
    %882 = vmatprep.subr.mxu0 0.0
    %883 = vmatpush1.xpose.msra.mxu0 0.0
    %884 = vmatprep.subr.mxu0 0.0
    %885 = vmatpush1.xpose.msra.mxu0 0.0
    %886 = vmatprep.subr.mxu0 0.0
    %887 = vmatpush1.xpose.msra.mxu0 0.0
    %888 = vmatprep.subr.mxu0 0.0
    %889 = vmatpush1.xpose.msra.mxu0 0.0
    %890 = vmatprep.subr.mxu0 0.0
    %891 = vmatpush1.xpose.msra.mxu0 0.0
    %892 = vmatprep.subr.mxu0 0.0
    %893 = vmatpush1.xpose.msra.mxu0 0.0
    %894 = vmatprep.subr.mxu0 0.0
    %895 = vmatpush1.xpose.msra.mxu0 0.0
    %896 = vmatprep.subr.mxu0 0.0
    %897 = vmatpush1.xpose.msra.mxu0 0.0
    %898 = vmatprep.subr.mxu0 0.0
    %899 = vmatpush1.xpose.msra.mxu0 0.0
    %900 = vmatprep.subr.mxu0 0.0
    %901 = vmatpush1.xpose.msra.mxu0 0.0
    %902 = vmatprep.subr.mxu0 0.0
    %903 = vmatpush1.xpose.msra.mxu0 0.0
    %904 = vmatprep.subr.mxu0 0.0
    %905 = vmatpush1.xpose.msra.mxu0 0.0
    %906 = vmatprep.subr.mxu0 0.0
    %907 = vmatpush1.xpose.msra.mxu0 0.0
    %908 = vmatprep.subr.mxu0 0.0
    %909 = vmatpush1.xpose.msra.mxu0 0.0
    %910 = vmatprep.subr.mxu0 0.0
    %911 = vmatpush1.xpose.msra.mxu0 0.0
    %912 = vmatprep.mubr.f32.mxu0 0.0
    %v913 = vand.u32 %v120, 4294901760
    %v914 = vsub.f32 %v120, %v913
    %915 = vmatmul.mubr.f32.gmra.mrb[0].mxu0 %v914
    %v916 = vpop.f32.mrb[0].mxu0
    %v917 = vadd.f32 %v831, %v916
    %v918 = vpop.f32.mrb[0].mxu0
    %919 = vmatprep.mubr.f32.mxu0 0.0
    %v920 = vand.u32 %v121, 4294901760
    %v921 = vsub.f32 %v121, %v920
    %922 = vmatmul.mubr.f32.gmra.mrb[0].mxu0 %v921
    %v923 = vpop.f32.mrb[0].mxu0
    %v924 = vadd.f32 %v837, %v923
    %v925 = vpop.f32.mrb[0].mxu0
    %926 = vdwg.mxu0
    %927 = vmatprep.subr.mxu0 0.0
    %v928 = vand.u32 %v122, 4294901760
    %929 = vmatpush1.xpose.msra.mxu0 %v928
    %930 = vmatprep.subr.mxu0 0.0
    %v931 = vand.u32 %v123, 4294901760
    %932 = vmatpush1.xpose.msra.mxu0 %v931
    %933 = vmatprep.subr.mxu0 0.0
    %v934 = vand.u32 %v124, 4294901760
    %935 = vmatpush1.xpose.msra.mxu0 %v934
    %936 = vmatprep.subr.mxu0 0.0
    %v937 = vand.u32 %v125, 4294901760
    %938 = vmatpush1.xpose.msra.mxu0 %v937
    %939 = vmatprep.subr.mxu0 0.0
    %940 = vmatpush1.xpose.msra.mxu0 0.0
    %941 = vmatprep.subr.mxu0 0.0
    %942 = vmatpush1.xpose.msra.mxu0 0.0
    %943 = vmatprep.subr.mxu0 0.0
    %944 = vmatpush1.xpose.msra.mxu0 0.0
    %945 = vmatprep.subr.mxu0 0.0
    %946 = vmatpush1.xpose.msra.mxu0 0.0
    %947 = vmatprep.subr.mxu0 0.0
    %948 = vmatpush1.xpose.msra.mxu0 0.0
    %949 = vmatprep.subr.mxu0 0.0
    %950 = vmatpush1.xpose.msra.mxu0 0.0
    %951 = vmatprep.subr.mxu0 0.0
    %952 = vmatpush1.xpose.msra.mxu0 0.0
    %953 = vmatprep.subr.mxu0 0.0
    %954 = vmatpush1.xpose.msra.mxu0 0.0
    %955 = vmatprep.subr.mxu0 0.0
    %956 = vmatpush1.xpose.msra.mxu0 0.0
    %957 = vmatprep.subr.mxu0 0.0
    %958 = vmatpush1.xpose.msra.mxu0 0.0
    %959 = vmatprep.subr.mxu0 0.0
    %960 = vmatpush1.xpose.msra.mxu0 0.0
    %961 = vmatprep.subr.mxu0 0.0
    %962 = vmatpush1.xpose.msra.mxu0 0.0
    %963 = vmatprep.subr.mxu0 0.0
    %964 = vmatpush1.xpose.msra.mxu0 0.0
    %965 = vmatprep.subr.mxu0 0.0
    %966 = vmatpush1.xpose.msra.mxu0 0.0
    %967 = vmatprep.subr.mxu0 0.0
    %968 = vmatpush1.xpose.msra.mxu0 0.0
    %969 = vmatprep.subr.mxu0 0.0
    %970 = vmatpush1.xpose.msra.mxu0 0.0
    %971 = vmatprep.subr.mxu0 0.0
    %972 = vmatpush1.xpose.msra.mxu0 0.0
    %973 = vmatprep.subr.mxu0 0.0
    %974 = vmatpush1.xpose.msra.mxu0 0.0
    %975 = vmatprep.subr.mxu0 0.0
    %976 = vmatpush1.xpose.msra.mxu0 0.0
    %977 = vmatprep.subr.mxu0 0.0
    %978 = vmatpush1.xpose.msra.mxu0 0.0
    %979 = vmatprep.subr.mxu0 0.0
    %980 = vmatpush1.xpose.msra.mxu0 0.0
    %981 = vmatprep.subr.mxu0 0.0
    %982 = vmatpush1.xpose.msra.mxu0 0.0
    %983 = vmatprep.subr.mxu0 0.0
    %984 = vmatpush1.xpose.msra.mxu0 0.0
    %985 = vmatprep.subr.mxu0 0.0
    %986 = vmatpush1.xpose.msra.mxu0 0.0
    %987 = vmatprep.subr.mxu0 0.0
    %988 = vmatpush1.xpose.msra.mxu0 0.0
    %989 = vmatprep.subr.mxu0 0.0
    %990 = vmatpush1.xpose.msra.mxu0 0.0
    %991 = vmatprep.subr.mxu0 0.0
    %992 = vmatpush1.xpose.msra.mxu0 0.0
    %993 = vmatprep.subr.mxu0 0.0
    %994 = vmatpush1.xpose.msra.mxu0 0.0
    %995 = vmatprep.mubr.f32.mxu0 0.0
    %v996 = vand.u32 %v120, 4294901760
    %v997 = vsub.f32 %v120, %v996
    %v998 = vand.u32 %v997, 4294901760
    %999 = vmatmul.mubr.f32.gmra.mrb[0].mxu0 %v998
    %v1000 = vpop.f32.mrb[0].mxu0
    %v1001 = vadd.f32 %v917, %v1000
    %v1002 = vpop.f32.mrb[0].mxu0
    %1003 = vmatprep.mubr.f32.mxu0 0.0
    %v1004 = vand.u32 %v121, 4294901760
    %v1005 = vsub.f32 %v121, %v1004
    %v1006 = vand.u32 %v1005, 4294901760
    %1007 = vmatmul.mubr.f32.gmra.mrb[0].mxu0 %v1006
    %v1008 = vpop.f32.mrb[0].mxu0
    %v1009 = vadd.f32 %v924, %v1008
    %v1010 = vpop.f32.mrb[0].mxu0
    %1011 = vdwg.mxu0
    %1012 = vmatprep.subr.mxu0 0.0
    %v1013 = vand.u32 %v122, 4294901760
    %v1014 = vsub.f32 %v122, %v1013
    %v1015 = vand.u32 %v1014, 4294901760
    %1016 = vmatpush1.xpose.msra.mxu0 %v1015
    %1017 = vmatprep.subr.mxu0 0.0
    %v1018 = vand.u32 %v123, 4294901760
    %v1019 = vsub.f32 %v123, %v1018
    %v1020 = vand.u32 %v1019, 4294901760
    %1021 = vmatpush1.xpose.msra.mxu0 %v1020
    %1022 = vmatprep.subr.mxu0 0.0
    %v1023 = vand.u32 %v124, 4294901760
    %v1024 = vsub.f32 %v124, %v1023
    %v1025 = vand.u32 %v1024, 4294901760
    %1026 = vmatpush1.xpose.msra.mxu0 %v1025
    %1027 = vmatprep.subr.mxu0 0.0
    %v1028 = vand.u32 %v125, 4294901760
    %v1029 = vsub.f32 %v125, %v1028
    %v1030 = vand.u32 %v1029, 4294901760
    %1031 = vmatpush1.xpose.msra.mxu0 %v1030
    %1032 = vmatprep.subr.mxu0 0.0
    %1033 = vmatpush1.xpose.msra.mxu0 0.0
    %1034 = vmatprep.subr.mxu0 0.0
    %1035 = vmatpush1.xpose.msra.mxu0 0.0
    %1036 = vmatprep.subr.mxu0 0.0
    %1037 = vmatpush1.xpose.msra.mxu0 0.0
    %1038 = vmatprep.subr.mxu0 0.0
    %1039 = vmatpush1.xpose.msra.mxu0 0.0
    %1040 = vmatprep.subr.mxu0 0.0
    %1041 = vmatpush1.xpose.msra.mxu0 0.0
    %1042 = vmatprep.subr.mxu0 0.0
    %1043 = vmatpush1.xpose.msra.mxu0 0.0
    %1044 = vmatprep.subr.mxu0 0.0
    %1045 = vmatpush1.xpose.msra.mxu0 0.0
    %1046 = vmatprep.subr.mxu0 0.0
    %1047 = vmatpush1.xpose.msra.mxu0 0.0
    %1048 = vmatprep.subr.mxu0 0.0
    %1049 = vmatpush1.xpose.msra.mxu0 0.0
    %1050 = vmatprep.subr.mxu0 0.0
    %1051 = vmatpush1.xpose.msra.mxu0 0.0
    %1052 = vmatprep.subr.mxu0 0.0
    %1053 = vmatpush1.xpose.msra.mxu0 0.0
    %1054 = vmatprep.subr.mxu0 0.0
    %1055 = vmatpush1.xpose.msra.mxu0 0.0
    %1056 = vmatprep.subr.mxu0 0.0
    %1057 = vmatpush1.xpose.msra.mxu0 0.0
    %1058 = vmatprep.subr.mxu0 0.0
    %1059 = vmatpush1.xpose.msra.mxu0 0.0
    %1060 = vmatprep.subr.mxu0 0.0
    %1061 = vmatpush1.xpose.msra.mxu0 0.0
    %1062 = vmatprep.subr.mxu0 0.0
    %1063 = vmatpush1.xpose.msra.mxu0 0.0
    %1064 = vmatprep.subr.mxu0 0.0
    %1065 = vmatpush1.xpose.msra.mxu0 0.0
    %1066 = vmatprep.subr.mxu0 0.0
    %1067 = vmatpush1.xpose.msra.mxu0 0.0
    %1068 = vmatprep.subr.mxu0 0.0
    %1069 = vmatpush1.xpose.msra.mxu0 0.0
    %1070 = vmatprep.subr.mxu0 0.0
    %1071 = vmatpush1.xpose.msra.mxu0 0.0
    %1072 = vmatprep.subr.mxu0 0.0
    %1073 = vmatpush1.xpose.msra.mxu0 0.0
    %1074 = vmatprep.subr.mxu0 0.0
    %1075 = vmatpush1.xpose.msra.mxu0 0.0
    %1076 = vmatprep.subr.mxu0 0.0
    %1077 = vmatpush1.xpose.msra.mxu0 0.0
    %1078 = vmatprep.subr.mxu0 0.0
    %1079 = vmatpush1.xpose.msra.mxu0 0.0
    %1080 = vmatprep.subr.mxu0 0.0
    %1081 = vmatpush1.xpose.msra.mxu0 0.0
    %1082 = vmatprep.subr.mxu0 0.0
    %1083 = vmatpush1.xpose.msra.mxu0 0.0
    %1084 = vmatprep.subr.mxu0 0.0
    %1085 = vmatpush1.xpose.msra.mxu0 0.0
    %1086 = vmatprep.subr.mxu0 0.0
    %1087 = vmatpush1.xpose.msra.mxu0 0.0
    %1088 = vmatprep.mubr.f32.mxu0 0.0
    %v1089 = vand.u32 %v120, 4294901760
    %1090 = vmatmul.mubr.f32.gmra.mrb[0].mxu0 %v1089
    %v1091 = vpop.f32.mrb[0].mxu0
    %v1092 = vadd.f32 %v1001, %v1091
    %v1093 = vpop.f32.mrb[0].mxu0
    %1094 = vmatprep.mubr.f32.mxu0 0.0
    %v1095 = vand.u32 %v121, 4294901760
    %1096 = vmatmul.mubr.f32.gmra.mrb[0].mxu0 %v1095
    %v1097 = vpop.f32.mrb[0].mxu0
    %v1098 = vadd.f32 %v1009, %v1097
    %v1099 = vpop.f32.mrb[0].mxu0
    %1100 = vdwg.mxu0
    %1101 = vmatprep.subr.mxu0 0.0
    %v1102 = vand.u32 %v122, 4294901760
    %1103 = vmatpush1.xpose.msra.mxu0 %v1102
    %1104 = vmatprep.subr.mxu0 0.0
    %v1105 = vand.u32 %v123, 4294901760
    %1106 = vmatpush1.xpose.msra.mxu0 %v1105
    %1107 = vmatprep.subr.mxu0 0.0
    %v1108 = vand.u32 %v124, 4294901760
    %1109 = vmatpush1.xpose.msra.mxu0 %v1108
    %1110 = vmatprep.subr.mxu0 0.0
    %v1111 = vand.u32 %v125, 4294901760
    %1112 = vmatpush1.xpose.msra.mxu0 %v1111
    %1113 = vmatprep.subr.mxu0 0.0
    %1114 = vmatpush1.xpose.msra.mxu0 0.0
    %1115 = vmatprep.subr.mxu0 0.0
    %1116 = vmatpush1.xpose.msra.mxu0 0.0
    %1117 = vmatprep.subr.mxu0 0.0
    %1118 = vmatpush1.xpose.msra.mxu0 0.0
    %1119 = vmatprep.subr.mxu0 0.0
    %1120 = vmatpush1.xpose.msra.mxu0 0.0
    %1121 = vmatprep.subr.mxu0 0.0
    %1122 = vmatpush1.xpose.msra.mxu0 0.0
    %1123 = vmatprep.subr.mxu0 0.0
    %1124 = vmatpush1.xpose.msra.mxu0 0.0
    %1125 = vmatprep.subr.mxu0 0.0
    %1126 = vmatpush1.xpose.msra.mxu0 0.0
    %1127 = vmatprep.subr.mxu0 0.0
    %1128 = vmatpush1.xpose.msra.mxu0 0.0
    %1129 = vmatprep.subr.mxu0 0.0
    %1130 = vmatpush1.xpose.msra.mxu0 0.0
    %1131 = vmatprep.subr.mxu0 0.0
    %1132 = vmatpush1.xpose.msra.mxu0 0.0
    %1133 = vmatprep.subr.mxu0 0.0
    %1134 = vmatpush1.xpose.msra.mxu0 0.0
    %1135 = vmatprep.subr.mxu0 0.0
    %1136 = vmatpush1.xpose.msra.mxu0 0.0
    %1137 = vmatprep.subr.mxu0 0.0
    %1138 = vmatpush1.xpose.msra.mxu0 0.0
    %1139 = vmatprep.subr.mxu0 0.0
    %1140 = vmatpush1.xpose.msra.mxu0 0.0
    %1141 = vmatprep.subr.mxu0 0.0
    %1142 = vmatpush1.xpose.msra.mxu0 0.0
    %1143 = vmatprep.subr.mxu0 0.0
    %1144 = vmatpush1.xpose.msra.mxu0 0.0
    %1145 = vmatprep.subr.mxu0 0.0
    %1146 = vmatpush1.xpose.msra.mxu0 0.0
    %1147 = vmatprep.subr.mxu0 0.0
    %1148 = vmatpush1.xpose.msra.mxu0 0.0
    %1149 = vmatprep.subr.mxu0 0.0
    %1150 = vmatpush1.xpose.msra.mxu0 0.0
    %1151 = vmatprep.subr.mxu0 0.0
    %1152 = vmatpush1.xpose.msra.mxu0 0.0
    %1153 = vmatprep.subr.mxu0 0.0
    %1154 = vmatpush1.xpose.msra.mxu0 0.0
    %1155 = vmatprep.subr.mxu0 0.0
    %1156 = vmatpush1.xpose.msra.mxu0 0.0
    %1157 = vmatprep.subr.mxu0 0.0
    %1158 = vmatpush1.xpose.msra.mxu0 0.0
    %1159 = vmatprep.subr.mxu0 0.0
    %1160 = vmatpush1.xpose.msra.mxu0 0.0
    %1161 = vmatprep.subr.mxu0 0.0
    %1162 = vmatpush1.xpose.msra.mxu0 0.0
    %1163 = vmatprep.subr.mxu0 0.0
    %1164 = vmatpush1.xpose.msra.mxu0 0.0
    %1165 = vmatprep.subr.mxu0 0.0
    %1166 = vmatpush1.xpose.msra.mxu0 0.0
    %1167 = vmatprep.subr.mxu0 0.0
    %1168 = vmatpush1.xpose.msra.mxu0 0.0
    %1169 = vmatprep.mubr.f32.mxu0 0.0
    %v1170 = vand.u32 %v120, 4294901760
    %1171 = vmatmul.mubr.f32.gmra.mrb[0].mxu0 %v1170
    %v1172 = vpop.f32.mrb[0].mxu0
    %v1173 = vadd.f32 %v1092, %v1172
    %v1174 = vpop.f32.mrb[0].mxu0
    %1175 = vmatprep.mubr.f32.mxu0 0.0
    %v1176 = vand.u32 %v121, 4294901760
    %1177 = vmatmul.mubr.f32.gmra.mrb[0].mxu0 %v1176
    %v1178 = vpop.f32.mrb[0].mxu0
    %v1179 = vadd.f32 %v1098, %v1178
    %v1180 = vpop.f32.mrb[0].mxu0
    %1181 = vdwg.mxu0
    %v1182 = vmul.f32 %v645, 10.0
    %v1183 = vmul.f32 %v651, 10.0
    %vm1184 = vcmask 261120
    %v1185 = vsel %vm1184, %v1182, -inf
    %1186 = vmax.xlane.f32.xlu0 %v1185
    %v1187 = vpop.xlane.xlu0 %1186
    %v1188 = vsel %vm1184, %v1183, -inf
    %1189 = vmax.xlane.f32.xlu0 %v1188
    %v1190 = vpop.xlane.xlu0 %1189
    %v1191 = vsub.f32 %v1182, %v1187
    %v1192 = vsub.f32 %v1183, %v1190
    %v1193 = vmul.f32 %v1191, 1.442695
    %v1194 = vpow.pop %v1193
    %v1195 = vmul.f32 %v1192, 1.442695
    %v1196 = vpow.pop %v1195
    %v1197 = vsel %vm1184, %v1194, 0.0
    %1198 = vadd.xlane.f32.xlu0 %v1197
    %v1199 = vpop.xlane.xlu0 %1198
    %v1200 = vsel %vm1184, %v1196, 0.0
    %1201 = vadd.xlane.f32.xlu0 %v1200
    %v1202 = vpop.xlane.xlu0 %1201
    %v1203 = vlog2.pop %v1199
    %v1204 = vmul.f32 %v1203, 0.6931472
    %v1205 = vlog2.pop %v1202
    %v1206 = vmul.f32 %v1205, 0.6931472
    %v1207 = vsub.f32 %v1191, %v1204
    %v1208 = vsub.f32 %v1192, %v1206
    %v1209 = vmul.f32 %v1173, 10.0
    %v1210 = vmul.f32 %v1179, 10.0
    %v1211 = vsel %vm1184, %v1209, -inf
    %1212 = vmax.xlane.f32.xlu0 %v1211
    %v1213 = vpop.xlane.xlu0 %1212
    %v1214 = vsel %vm1184, %v1210, -inf
    %1215 = vmax.xlane.f32.xlu0 %v1214
    %v1216 = vpop.xlane.xlu0 %1215
    %v1217 = vsub.f32 %v1209, %v1213
    %v1218 = vsub.f32 %v1210, %v1216
    %v1219 = vmul.f32 %v1217, 1.442695
    %v1220 = vpow.pop %v1219
    %v1221 = vmul.f32 %v1218, 1.442695
    %v1222 = vpow.pop %v1221
    %v1223 = vsel %vm1184, %v1220, 0.0
    %1224 = vadd.xlane.f32.xlu0 %v1223
    %v1225 = vpop.xlane.xlu0 %1224
    %v1226 = vsel %vm1184, %v1222, 0.0
    %1227 = vadd.xlane.f32.xlu0 %v1226
    %v1228 = vpop.xlane.xlu0 %1227
    %v1229 = vlog2.pop %v1225
    %v1230 = vmul.f32 %v1229, 0.6931472
    %v1231 = vlog2.pop %v1228
    %v1232 = vmul.f32 %v1231, 0.6931472
    %v1233 = vsub.f32 %v1217, %v1230
    %v1234 = vsub.f32 %v1218, %v1232
    %v1235 = vmul.f32 %v645, 100.0
    %v1236 = vmul.f32 %v651, 100.0
    %v1237 = vsel %vm1184, %v1235, -inf
    %1238 = vmax.xlane.f32.xlu0 %v1237
    %v1239 = vpop.xlane.xlu0 %1238
    %v1240 = vsel %vm1184, %v1236, -inf
    %1241 = vmax.xlane.f32.xlu0 %v1240
    %v1242 = vpop.xlane.xlu0 %1241
    %v1243 = vsub.f32 %v1235, %v1239
    %v1244 = vsub.f32 %v1236, %v1242
    %v1245 = vmul.f32 %v1243, 1.442695
    %v1246 = vpow.pop %v1245
    %v1247 = vmul.f32 %v1244, 1.442695
    %v1248 = vpow.pop %v1247
    %v1249 = vsel %vm1184, %v1246, 0.0
    %1250 = vadd.xlane.f32.xlu0 %v1249
    %v1251 = vpop.xlane.xlu0 %1250
    %v1252 = vsel %vm1184, %v1248, 0.0
    %1253 = vadd.xlane.f32.xlu0 %v1252
    %v1254 = vpop.xlane.xlu0 %1253
    %v1255 = vrcp.pop %v1251
    %v1256 = vmul.f32 %v1246, %v1255
    %v1257 = vrcp.pop %v1254
    %v1258 = vmul.f32 %v1248, %v1257
    %v1259 = vmul.f32 %v1173, 100.0
    %v1260 = vmul.f32 %v1179, 100.0
    %v1261 = vsel %vm1184, %v1259, -inf
    %1262 = vmax.xlane.f32.xlu0 %v1261
    %v1263 = vpop.xlane.xlu0 %1262
    %v1264 = vsel %vm1184, %v1260, -inf
    %1265 = vmax.xlane.f32.xlu0 %v1264
    %v1266 = vpop.xlane.xlu0 %1265
    %v1267 = vsub.f32 %v1259, %v1263
    %v1268 = vsub.f32 %v1260, %v1266
    %v1269 = vmul.f32 %v1267, 1.442695
    %v1270 = vpow.pop %v1269
    %v1271 = vmul.f32 %v1268, 1.442695
    %v1272 = vpow.pop %v1271
    %v1273 = vsel %vm1184, %v1270, 0.0
    %1274 = vadd.xlane.f32.xlu0 %v1273
    %v1275 = vpop.xlane.xlu0 %1274
    %v1276 = vsel %vm1184, %v1272, 0.0
    %1277 = vadd.xlane.f32.xlu0 %v1276
    %v1278 = vpop.xlane.xlu0 %1277
    %v1279 = vrcp.pop %v1275
    %v1280 = vmul.f32 %v1270, %v1279
    %v1281 = vrcp.pop %v1278
    %v1282 = vmul.f32 %v1272, %v1281
    %v1283 = vadd.f32 %v1256, %v1280
    %v1284 = vadd.f32 %v1258, %v1282
    %v1285 = vmul.f32 %v1283, 0.5
    %v1286 = vmul.f32 %v1284, 0.5
    %vm1287 = vcmp.gt.f32.partialorder %v1285, 0.0
    %vm1288 = vcmp.gt.f32.partialorder %v1286, 0.0
    %v1289 = vsel %vm1287, %v1285, 1.0
    %v1290 = vsel %vm1288, %v1286, 1.0
    %v1291 = vlog2.pop %v1289
    %v1292 = vmul.f32 %v1291, 0.6931472
    %v1293 = vlog2.pop %v1290
    %v1294 = vmul.f32 %v1293, 0.6931472
    %v1295 = vmul.f32 %v1285, %v1292
    %v1296 = vmul.f32 %v1286, %v1294
    %v1297 = vmul.f32 %v1295, 2.0
    %v1298 = vmul.f32 %v1296, 2.0
    %v1299 = vadd.f32 %v1207, %v1233
    %v1300 = vadd.f32 %v1208, %v1234
    %v1301 = vmul.f32 %v1285, %v1299
    %v1302 = vmul.f32 %v1286, %v1300
    %v1303 = vsub.f32 %v1297, %v1301
    %v1304 = vsub.f32 %v1298, %v1302
    %v1305 = vsel %vm1184, %v1303, 0.0
    %1306 = vadd.xlane.f32.xlu0 %v1305
    %v1307 = vpop.xlane.xlu0 %1306
    %v1308 = vsel %vm1184, %v1304, 0.0
    %1309 = vadd.xlane.f32.xlu0 %v1308
    %v1310 = vpop.xlane.xlu0 %1309
    %v1311 = vlaneseq
    %v1312 = vshrl.u32 %v1311, 7
    %v1313 = vadd.s32 %v1312, 8
    %s1314 = smul.u32 0, 16
    %v1315 = vstv %s1314
    %v1316 = vadd.s32 %v1312, %v1315
    %v1317 = vadd.s32 %v1313, %v1315
    %vm1318 = vcmp.lt.s32.totalorder %v1316, 16
    %vm1319 = vcmp.lt.s32.totalorder %v1317, 16
    %v1320 = vsel %vm1318, 1, 0
    %v1321 = vsel %vm1319, 1, 0
    %v1322 = vcvt.s32.f32 %v1320
    %v1323 = vcvt.s32.f32 %v1321
    %v1324 = vld [vmem:[#allocation9] sm:$0x1]
    %v1325 = vmul.f32 %v1307, %v1322
    %v1326 = vmul.f32 %v1310, %v1323
    %v1327 = vadd.f32 %v1325, %v1326
    %v1328 = vrot.slane %v1327, 4
    %v1329 = vadd.f32 %v1327, %v1328
    %v1330 = vrot.slane %v1329, 2
    %v1331 = vadd.f32 %v1329, %v1330
    %v1332 = vrot.slane %v1331, 1
    %v1333 = vadd.f32 %v1331, %v1332
    %v1334 = vmul.f32 %v1333, 0.03125
    %v1335 = vadd.f32 %v1324, %v1334
    %vm1336 = vcmask 0
    %1337 = vst.msk [vmem:[#allocation9] sm:$0x1] %vm1336, %v1335
    // Predicated region
    $region30: #{tpu_custom_call.1} parent=1 // pred_check
      _
    $region31: #{tpu_custom_call.1} parent=1 // pred_check_branch
      %1339 = sbr.rel (0) target = $region33
    $region32: #{tpu_custom_call.1} parent=1 // pred_region
      %s1341 = ssub.s32 16, 16
      %1342 = vsyncadd [#allocation5], %s1341
      %s1344 = sshll.u32 [#allocation9], 4
      %s1345 = int_to_ptr.vmem [resolvable:$true] %s1344
      %1347 = dma.vmem_to_hbm [thread:$0]  %s1345, 16, %s3, [#allocation5]
    $region33: #{tpu_custom_call.1} parent=1 // pred_fallthru
      _
    // Predicated region
    $region34: #{tpu_custom_call.1} parent=1 // pred_check
      _
    $region35: #{tpu_custom_call.1} parent=1 // pred_check_branch
      %1349 = sbr.rel (0) target = $region37
    $region36: #{tpu_custom_call.1} parent=1 // pred_region
      %1350 = dma.done [#allocation5], 16
    $region37: #{tpu_custom_call.1} parent=1 // pred_fallthru
      _
    %1351 = vsyncpa [#allocation4], 1
    %1352 = vsyncpa [#allocation7], 1
    %1353 = vsyncpa [#allocation5], 1

</llo_original>
